<compile_context>
chip_gen: v7x
topology: tpu7x:2x2x1
jax: 0.10.0
libtpu: 0.0.40
codegen_flags: <defaults>
</compile_context>

<pallas_src>
import jax
import jax.numpy as jnp
from jax.experimental import pallas as pl
from jax.experimental.pallas import tpu as pltpu

INPUT_DIM = 3
OUTPUT_DIM = 3
HIDDEN_DIM = 128          # small but lane-aligned (PyTorch default is 256)
NUM_LAYERS = 4            # -> 3 modulated linear layers
EXTRA_LAYERS = 3

LANE = 128
SUBLANE = 8


def _round_up(x, m):
    return (x + m - 1) // m * m


def modulated_mlp_kernel(coords_ref, gamma_ref, beta_ref,
                         w0_ref, b0_ref,
                         wmod_ref, bmod_ref,
                         wext_ref, bext_ref,
                         wout_ref, bout_ref,
                         out_ref):
    H = w0_ref.shape[1]
    in_dim = w0_ref.shape[0]

    # ---- first modulated layer: Linear(input_dim -> H), ReLU, FiLM ----------
    # K = in_dim = 3 would be almost all padding on the systolic array; do it
    # as three broadcast mul-adds on the VPU (which has slack) instead.
    coords = coords_ref[...]                              # (tm, in_dim) f32
    h = b0_ref[...]                                       # (1, H) -> bcast
    for k in range(in_dim):                               # static unroll
        h = h + coords[:, k:k + 1] * w0_ref[k:k + 1, :]
    h = jnp.maximum(h, 0.0)
    g = gamma_ref[:, 0:H].astype(jnp.float32)             # upcast if bf16 input
    b = beta_ref[:, 0:H].astype(jnp.float32)
    h = g * h + b

    # ---- remaining modulated hidden layers (H -> H), bf16 MXU ----------------
    n_mod = wmod_ref.shape[0]                              # static
    for i in range(n_mod):
        h = jnp.dot(h.astype(jnp.bfloat16), wmod_ref[i],
                    preferred_element_type=jnp.float32) + bmod_ref[i]
        h = jnp.maximum(h, 0.0)
        lo = (i + 1) * H
        hi = (i + 2) * H
        g = gamma_ref[:, lo:hi].astype(jnp.float32)
        b = beta_ref[:, lo:hi].astype(jnp.float32)
        h = g * h + b

    # ---- extra (non-modulated) layers ----------------------------------------
    n_ext = wext_ref.shape[0]                              # static
    for i in range(n_ext):
        h = jnp.dot(h.astype(jnp.bfloat16), wext_ref[i],
                    preferred_element_type=jnp.float32) + bext_ref[i]
        h = jnp.maximum(h, 0.0)

    # ---- output projection (H -> 8-lane padded output) -----------------------
    out = jnp.dot(h.astype(jnp.bfloat16), wout_ref[...],
                  preferred_element_type=jnp.float32) + bout_ref[...]
    out_ref[...] = out.astype(out_ref.dtype)


def modulated_mlp(coords, gamma, beta, params, *, tm=2048):
    """coords: (N, input_dim), gamma/beta: (N, (num_layers-1)*H) -> (N, output_dim)."""
    N, in_dim = coords.shape
    H = params["w0"].shape[1]
    out_dim = params["wout"].shape[1]
    n_mod = params["wmod"].shape[0]
    n_ext = params["wext"].shape[0]
    gdim = gamma.shape[1]

    # Shape sanity (a silent mismatch would read wrong FiLM slices).
    assert in_dim == params["w0"].shape[0], (in_dim, params["w0"].shape)
    assert gdim == (n_mod + 1) * H, (gdim, n_mod, H)
    assert beta.shape == gamma.shape, (beta.shape, gamma.shape)
    assert gamma.shape[0] == N and beta.shape[0] == N

    # Batch tile: clamp to the (sublane-rounded) problem size.  No jnp.pad —
    # ragged last blocks are handled by Pallas' masked boundary DMAs.
    tm_eff = max(SUBLANE, min(tm, _round_up(N, SUBLANE)))
    # For mid-size N keep at least ~4 grid steps (both v7x TCs busy, pipeline
    # overlapped) without dropping the tile below 1024 rows (v5e/v6e overhead).
    while pl.cdiv(N, tm_eff) < 4 and tm_eff > 1024:
        tm_eff = _round_up(tm_eff // 2, SUBLANE)
    grid = (pl.cdiv(N, tm_eff),)

    # gamma/beta streamed as-is (no wrapper cast; see header comment).
    # bf16 weights for the MXU; f32 biases shaped (., 1, H) for a clean
    # sublane-broadcast add.  First-layer weight stays f32 (VPU path).
    w0 = params["w0"].astype(jnp.float32)
    b0 = params["b0"].astype(jnp.float32)
    wmod = params["wmod"].astype(jnp.bfloat16)
    wext = params["wext"].astype(jnp.bfloat16)
    bmod = params["bmod"].reshape(n_mod, 1, H).astype(jnp.float32)
    bext = params["bext"].reshape(n_ext, 1, H).astype(jnp.float32)

    # Narrow output slab: pad 3 -> 8 lanes only (last dim == full array dim is
    # exempt from the (8,128) rule) so the writeback is 32 B/row.
    out_pad = _round_up(out_dim, SUBLANE)
    wout = jnp.pad(params["wout"],
                   ((0, 0), (0, out_pad - out_dim))).astype(jnp.bfloat16)
    bout = jnp.pad(params["bout"],
                   ((0, 0), (0, out_pad - out_dim))).astype(jnp.float32)

    row = lambda i: (i, 0)
    const2 = lambda i: (0, 0)
    const3 = lambda i: (0, 0, 0)

    # Advisory cost estimate so XLA overlaps producers/consumers around the call.
    flops = (2 * N * in_dim * H
             + 2 * N * H * H * (n_mod + n_ext)
             + 2 * N * H * out_pad)
    weight_bytes = sum(int(a.size) * a.dtype.itemsize
                       for a in (w0, b0, wmod, bmod, wext, bext, wout, bout))
    bytes_accessed = (int(coords.size) * coords.dtype.itemsize
                      + int(gamma.size) * gamma.dtype.itemsize
                      + int(beta.size) * beta.dtype.itemsize
                      + N * out_pad * 4
                      + weight_bytes)

    out = pl.pallas_call(
        modulated_mlp_kernel,
        out_shape=jax.ShapeDtypeStruct((N, out_pad), jnp.float32),
        grid_spec=pltpu.PrefetchScalarGridSpec(
            num_scalar_prefetch=0,
            grid=grid,
            in_specs=[
                pl.BlockSpec((tm_eff, in_dim), row),     # coords tile
                pl.BlockSpec((tm_eff, gdim),  row),      # gamma tile
                pl.BlockSpec((tm_eff, gdim),  row),      # beta tile
                pl.BlockSpec(w0.shape,   const2),        # (in_dim, H)   f32
                pl.BlockSpec(b0.shape,   const2),        # (1, H)        f32
                pl.BlockSpec(wmod.shape, const3),        # (n_mod, H, H) bf16
                pl.BlockSpec(bmod.shape, const3),        # (n_mod, 1, H) f32
                pl.BlockSpec(wext.shape, const3),        # (n_ext, H, H) bf16
                pl.BlockSpec(bext.shape, const3),        # (n_ext, 1, H) f32
                pl.BlockSpec(wout.shape, const2),        # (H, out_pad)  bf16
                pl.BlockSpec(bout.shape, const2),        # (1, out_pad)  f32
            ],
            out_specs=pl.BlockSpec((tm_eff, out_pad), row),
        ),
        compiler_params=pltpu.CompilerParams(
            dimension_semantics=("parallel",),
            vmem_limit_bytes=48 * 1024 * 1024,           # headroom on v7x (64 MiB)
        ),
        cost_estimate=pl.CostEstimate(
            flops=int(flops),
            transcendentals=0,
            bytes_accessed=int(bytes_accessed)),
    )(coords, gamma, beta,
      w0, b0, wmod, bmod, wext, bext, wout, bout)

    return out[:, :out_dim]


def init_params(key, in_dim, out_dim, H, num_layers, extra_layers):
    """Deterministic synthetic parameters. Weights stored as (in, out)."""
    n_mod = num_layers - 2
    keys = jax.random.split(key, 8)
    s = 0.1
    return {
        "w0":   s * jax.random.normal(keys[0], (in_dim, H), jnp.float32),
        "b0":   s * jax.random.normal(keys[1], (1, H), jnp.float32),
        "wmod": s * jax.random.normal(keys[2], (n_mod, H, H), jnp.float32),
        "bmod": s * jax.random.normal(keys[3], (n_mod, H), jnp.float32),
        "wext": s * jax.random.normal(keys[4], (extra_layers, H, H), jnp.float32),
        "bext": s * jax.random.normal(keys[5], (extra_layers, H), jnp.float32),
        "wout": s * jax.random.normal(keys[6], (H, out_dim), jnp.float32),
        "bout": s * jax.random.normal(keys[7], (1, out_dim), jnp.float32),
    }


def reference_forward(coords, gamma, beta, params):
    """Pure-JAX f32 reference mirroring the PyTorch forward exactly."""
    H = params["w0"].shape[1]
    h = jnp.maximum(coords @ params["w0"] + params["b0"], 0.0)
    h = gamma[:, 0:H] * h + beta[:, 0:H]
    for i in range(params["wmod"].shape[0]):
        h = jnp.maximum(h @ params["wmod"][i] + params["bmod"][i], 0.0)
        h = gamma[:, (i + 1) * H:(i + 2) * H] * h + beta[:, (i + 1) * H:(i + 2) * H]
    for i in range(params["wext"].shape[0]):
        h = jnp.maximum(h @ params["wext"][i] + params["bext"][i], 0.0)
    return h @ params["wout"] + params["bout"]


if __name__ == "__main__":
    key = jax.random.PRNGKey(0)
    k_par, k_c, k_g, k_b = jax.random.split(key, 4)

    # N deliberately NOT a multiple of 8 to exercise the pad-free ragged path.
    N = 100
    params = init_params(k_par, INPUT_DIM, OUTPUT_DIM, HIDDEN_DIM,
                         NUM_LAYERS, EXTRA_LAYERS)

    coords = jax.random.normal(k_c, (N, INPUT_DIM), jnp.float32)
    film_dim = (NUM_LAYERS - 1) * HIDDEN_DIM
    gamma = 1.0 + 0.1 * jax.random.normal(k_g, (N, film_dim), jnp.float32)
    beta = 0.1 * jax.random.normal(k_b, (N, film_dim), jnp.float32)

    out = modulated_mlp(coords, gamma, beta, params)
    out = jax.block_until_ready(out)

    ref = reference_forward(coords, gamma, beta, params)
    assert out.shape == (N, OUTPUT_DIM)
    # bf16 MXU weights/activations across 6 layers -> loosened tolerance vs f32 ref.
    assert jnp.allclose(out, ref, atol=3e-2, rtol=3e-2), float(
        jnp.max(jnp.abs(out - ref)))

    print("KERNEL_OK")
</pallas_src>

<mosaic_0001>
module attributes {stable_mosaic.version = 11 : i64} {
  func.func @modulated_mlp_kernel(%arg0: i32, %arg1: memref<104x3xf32, #tpu.memory_space<vmem>>, %arg2: memref<104x384xf32, #tpu.memory_space<vmem>>, %arg3: memref<104x384xf32, #tpu.memory_space<vmem>>, %arg4: memref<3x128xf32, #tpu.memory_space<vmem>>, %arg5: memref<1x128xf32, #tpu.memory_space<vmem>>, %arg6: memref<2x128x128xbf16, #tpu.memory_space<vmem>>, %arg7: memref<2x1x128xf32, #tpu.memory_space<vmem>>, %arg8: memref<3x128x128xbf16, #tpu.memory_space<vmem>>, %arg9: memref<3x1x128xf32, #tpu.memory_space<vmem>>, %arg10: memref<128x8xbf16, #tpu.memory_space<vmem>>, %arg11: memref<1x8xf32, #tpu.memory_space<vmem>>, %arg12: memref<104x8xf32, #tpu.memory_space<vmem>>) attributes {dimension_semantics = [#tpu.dimension_semantics<parallel>], iteration_bounds = array<i64: 1>, scalar_prefetch = 0 : i64, scratch_operands = 0 : i64, tpu.core_type = #tpu.core_type<tc>, window_params = [{transform_indices = @transform_0, window_bounds = array<i64: 104, 3>}, {transform_indices = @transform_1, window_bounds = array<i64: 104, 384>}, {transform_indices = @transform_2, window_bounds = array<i64: 104, 384>}, {pipeline_mode = #tpu.pipeline_mode<synchronous>, transform_indices = @transform_3, window_bounds = array<i64: 3, 128>}, {pipeline_mode = #tpu.pipeline_mode<synchronous>, transform_indices = @transform_4, window_bounds = array<i64: 1, 128>}, {pipeline_mode = #tpu.pipeline_mode<synchronous>, transform_indices = @transform_5, window_bounds = array<i64: 2, 128, 128>}, {pipeline_mode = #tpu.pipeline_mode<synchronous>, transform_indices = @transform_6, window_bounds = array<i64: 2, 1, 128>}, {pipeline_mode = #tpu.pipeline_mode<synchronous>, transform_indices = @transform_7, window_bounds = array<i64: 3, 128, 128>}, {pipeline_mode = #tpu.pipeline_mode<synchronous>, transform_indices = @transform_8, window_bounds = array<i64: 3, 1, 128>}, {pipeline_mode = #tpu.pipeline_mode<synchronous>, transform_indices = @transform_9, window_bounds = array<i64: 128, 8>}, {pipeline_mode = #tpu.pipeline_mode<synchronous>, transform_indices = @transform_10, window_bounds = array<i64: 1, 8>}, {transform_indices = @transform_11, window_bounds = array<i64: 104, 8>}]} {
    %c0 = arith.constant 0 : index
    %c0_0 = arith.constant 0 : index
    %0 = vector.load %arg1[%c0, %c0_0] : memref<104x3xf32, #tpu.memory_space<vmem>>, vector<104x3xf32>
    %c0_1 = arith.constant 0 : index
    %c0_2 = arith.constant 0 : index
    %1 = vector.load %arg5[%c0_1, %c0_2] : memref<1x128xf32, #tpu.memory_space<vmem>>, vector<1x128xf32>
    %2 = vector.extract_strided_slice %0 {offsets = [0, 0], sizes = [104, 1], strides = [1, 1]} : vector<104x3xf32> to vector<104x1xf32>
    %c0_3 = arith.constant 0 : index
    %c0_4 = arith.constant 0 : index
    %3 = vector.load %arg4[%c0_3, %c0_4] : memref<3x128xf32, #tpu.memory_space<vmem>>, vector<1x128xf32>
    %4 = vector.broadcast %2 : vector<104x1xf32> to vector<104x128xf32>
    %5 = vector.broadcast %3 : vector<1x128xf32> to vector<104x128xf32>
    %6 = arith.mulf %4, %5 : vector<104x128xf32>
    %7 = vector.broadcast %1 : vector<1x128xf32> to vector<104x128xf32>
    %8 = arith.addf %7, %6 : vector<104x128xf32>
    %9 = vector.extract_strided_slice %0 {offsets = [0, 1], sizes = [104, 1], strides = [1, 1]} : vector<104x3xf32> to vector<104x1xf32>
    %c1 = arith.constant 1 : index
    %c0_5 = arith.constant 0 : index
    %10 = vector.load %arg4[%c1, %c0_5] : memref<3x128xf32, #tpu.memory_space<vmem>>, vector<1x128xf32>
    %11 = vector.broadcast %9 : vector<104x1xf32> to vector<104x128xf32>
    %12 = vector.broadcast %10 : vector<1x128xf32> to vector<104x128xf32>
    %13 = arith.mulf %11, %12 : vector<104x128xf32>
    %14 = arith.addf %8, %13 : vector<104x128xf32>
    %15 = vector.extract_strided_slice %0 {offsets = [0, 2], sizes = [104, 1], strides = [1, 1]} : vector<104x3xf32> to vector<104x1xf32>
    %c2 = arith.constant 2 : index
    %c0_6 = arith.constant 0 : index
    %16 = vector.load %arg4[%c2, %c0_6] : memref<3x128xf32, #tpu.memory_space<vmem>>, vector<1x128xf32>
    %17 = vector.broadcast %15 : vector<104x1xf32> to vector<104x128xf32>
    %18 = vector.broadcast %16 : vector<1x128xf32> to vector<104x128xf32>
    %19 = arith.mulf %17, %18 : vector<104x128xf32>
    %20 = arith.addf %14, %19 : vector<104x128xf32>
    %cst = arith.constant 0.000000e+00 : f32
    %21 = vector.broadcast %cst : f32 to vector<104x128xf32>
    %22 = arith.maximumf %20, %21 : vector<104x128xf32>
    %c0_7 = arith.constant 0 : index
    %c0_8 = arith.constant 0 : index
    %23 = vector.load %arg2[%c0_7, %c0_8] : memref<104x384xf32, #tpu.memory_space<vmem>>, vector<104x128xf32>
    %c0_9 = arith.constant 0 : index
    %c0_10 = arith.constant 0 : index
    %24 = vector.load %arg3[%c0_9, %c0_10] : memref<104x384xf32, #tpu.memory_space<vmem>>, vector<104x128xf32>
    %25 = arith.mulf %23, %22 : vector<104x128xf32>
    %26 = arith.addf %25, %24 : vector<104x128xf32>
    %27 = arith.truncf %26 : vector<104x128xf32> to vector<104x128xbf16>
    %c0_11 = arith.constant 0 : index
    %c0_12 = arith.constant 0 : index
    %c0_13 = arith.constant 0 : index
    %28 = vector.load %arg6[%c0_11, %c0_12, %c0_13] : memref<2x128x128xbf16, #tpu.memory_space<vmem>>, vector<1x128x128xbf16>
    %29 = vector.shape_cast %28 : vector<1x128x128xbf16> to vector<128x128xbf16>
    %cst_14 = arith.constant dense<0.000000e+00> : vector<104x128xf32>
    %30 = tpu.matmul %27, %29, %cst_14 {dimension_numbers = #tpu.dot_dimension_numbers<[1], [0], [0], [1], [0, 0, 1, 1], [], []>} : vector<104x128xbf16>, vector<128x128xbf16>, vector<104x128xf32> -> vector<104x128xf32>
    %c0_15 = arith.constant 0 : index
    %c0_16 = arith.constant 0 : index
    %c0_17 = arith.constant 0 : index
    %31 = vector.load %arg7[%c0_15, %c0_16, %c0_17] : memref<2x1x128xf32, #tpu.memory_space<vmem>>, vector<1x1x128xf32>
    %32 = vector.shape_cast %31 : vector<1x1x128xf32> to vector<1x128xf32>
    %33 = vector.broadcast %32 : vector<1x128xf32> to vector<104x128xf32>
    %34 = arith.addf %30, %33 : vector<104x128xf32>
    %cst_18 = arith.constant 0.000000e+00 : f32
    %35 = vector.broadcast %cst_18 : f32 to vector<104x128xf32>
    %36 = arith.maximumf %34, %35 : vector<104x128xf32>
    %c0_19 = arith.constant 0 : index
    %c128 = arith.constant 128 : index
    %37 = vector.load %arg2[%c0_19, %c128] : memref<104x384xf32, #tpu.memory_space<vmem>>, vector<104x128xf32>
    %c0_20 = arith.constant 0 : index
    %c128_21 = arith.constant 128 : index
    %38 = vector.load %arg3[%c0_20, %c128_21] : memref<104x384xf32, #tpu.memory_space<vmem>>, vector<104x128xf32>
    %39 = arith.mulf %37, %36 : vector<104x128xf32>
    %40 = arith.addf %39, %38 : vector<104x128xf32>
    %41 = arith.truncf %40 : vector<104x128xf32> to vector<104x128xbf16>
    %c1_22 = arith.constant 1 : index
    %c0_23 = arith.constant 0 : index
    %c0_24 = arith.constant 0 : index
    %42 = vector.load %arg6[%c1_22, %c0_23, %c0_24] : memref<2x128x128xbf16, #tpu.memory_space<vmem>>, vector<1x128x128xbf16>
    %43 = vector.shape_cast %42 : vector<1x128x128xbf16> to vector<128x128xbf16>
    %cst_25 = arith.constant dense<0.000000e+00> : vector<104x128xf32>
    %44 = tpu.matmul %41, %43, %cst_25 {dimension_numbers = #tpu.dot_dimension_numbers<[1], [0], [0], [1], [0, 0, 1, 1], [], []>} : vector<104x128xbf16>, vector<128x128xbf16>, vector<104x128xf32> -> vector<104x128xf32>
    %c1_26 = arith.constant 1 : index
    %c0_27 = arith.constant 0 : index
    %c0_28 = arith.constant 0 : index
    %45 = vector.load %arg7[%c1_26, %c0_27, %c0_28] : memref<2x1x128xf32, #tpu.memory_space<vmem>>, vector<1x1x128xf32>
    %46 = vector.shape_cast %45 : vector<1x1x128xf32> to vector<1x128xf32>
    %47 = vector.broadcast %46 : vector<1x128xf32> to vector<104x128xf32>
    %48 = arith.addf %44, %47 : vector<104x128xf32>
    %cst_29 = arith.constant 0.000000e+00 : f32
    %49 = vector.broadcast %cst_29 : f32 to vector<104x128xf32>
    %50 = arith.maximumf %48, %49 : vector<104x128xf32>
    %c0_30 = arith.constant 0 : index
    %c256 = arith.constant 256 : index
    %51 = vector.load %arg2[%c0_30, %c256] : memref<104x384xf32, #tpu.memory_space<vmem>>, vector<104x128xf32>
    %c0_31 = arith.constant 0 : index
    %c256_32 = arith.constant 256 : index
    %52 = vector.load %arg3[%c0_31, %c256_32] : memref<104x384xf32, #tpu.memory_space<vmem>>, vector<104x128xf32>
    %53 = arith.mulf %51, %50 : vector<104x128xf32>
    %54 = arith.addf %53, %52 : vector<104x128xf32>
    %55 = arith.truncf %54 : vector<104x128xf32> to vector<104x128xbf16>
    %c0_33 = arith.constant 0 : index
    %c0_34 = arith.constant 0 : index
    %c0_35 = arith.constant 0 : index
    %56 = vector.load %arg8[%c0_33, %c0_34, %c0_35] : memref<3x128x128xbf16, #tpu.memory_space<vmem>>, vector<1x128x128xbf16>
    %57 = vector.shape_cast %56 : vector<1x128x128xbf16> to vector<128x128xbf16>
    %cst_36 = arith.constant dense<0.000000e+00> : vector<104x128xf32>
    %58 = tpu.matmul %55, %57, %cst_36 {dimension_numbers = #tpu.dot_dimension_numbers<[1], [0], [0], [1], [0, 0, 1, 1], [], []>} : vector<104x128xbf16>, vector<128x128xbf16>, vector<104x128xf32> -> vector<104x128xf32>
    %c0_37 = arith.constant 0 : index
    %c0_38 = arith.constant 0 : index
    %c0_39 = arith.constant 0 : index
    %59 = vector.load %arg9[%c0_37, %c0_38, %c0_39] : memref<3x1x128xf32, #tpu.memory_space<vmem>>, vector<1x1x128xf32>
    %60 = vector.shape_cast %59 : vector<1x1x128xf32> to vector<1x128xf32>
    %61 = vector.broadcast %60 : vector<1x128xf32> to vector<104x128xf32>
    %62 = arith.addf %58, %61 : vector<104x128xf32>
    %cst_40 = arith.constant 0.000000e+00 : f32
    %63 = vector.broadcast %cst_40 : f32 to vector<104x128xf32>
    %64 = arith.maximumf %62, %63 : vector<104x128xf32>
    %65 = arith.truncf %64 : vector<104x128xf32> to vector<104x128xbf16>
    %c1_41 = arith.constant 1 : index
    %c0_42 = arith.constant 0 : index
    %c0_43 = arith.constant 0 : index
    %66 = vector.load %arg8[%c1_41, %c0_42, %c0_43] : memref<3x128x128xbf16, #tpu.memory_space<vmem>>, vector<1x128x128xbf16>
    %67 = vector.shape_cast %66 : vector<1x128x128xbf16> to vector<128x128xbf16>
    %cst_44 = arith.constant dense<0.000000e+00> : vector<104x128xf32>
    %68 = tpu.matmul %65, %67, %cst_44 {dimension_numbers = #tpu.dot_dimension_numbers<[1], [0], [0], [1], [0, 0, 1, 1], [], []>} : vector<104x128xbf16>, vector<128x128xbf16>, vector<104x128xf32> -> vector<104x128xf32>
    %c1_45 = arith.constant 1 : index
    %c0_46 = arith.constant 0 : index
    %c0_47 = arith.constant 0 : index
    %69 = vector.load %arg9[%c1_45, %c0_46, %c0_47] : memref<3x1x128xf32, #tpu.memory_space<vmem>>, vector<1x1x128xf32>
    %70 = vector.shape_cast %69 : vector<1x1x128xf32> to vector<1x128xf32>
    %71 = vector.broadcast %70 : vector<1x128xf32> to vector<104x128xf32>
    %72 = arith.addf %68, %71 : vector<104x128xf32>
    %cst_48 = arith.constant 0.000000e+00 : f32
    %73 = vector.broadcast %cst_48 : f32 to vector<104x128xf32>
    %74 = arith.maximumf %72, %73 : vector<104x128xf32>
    %75 = arith.truncf %74 : vector<104x128xf32> to vector<104x128xbf16>
    %c2_49 = arith.constant 2 : index
    %c0_50 = arith.constant 0 : index
    %c0_51 = arith.constant 0 : index
    %76 = vector.load %arg8[%c2_49, %c0_50, %c0_51] : memref<3x128x128xbf16, #tpu.memory_space<vmem>>, vector<1x128x128xbf16>
    %77 = vector.shape_cast %76 : vector<1x128x128xbf16> to vector<128x128xbf16>
    %cst_52 = arith.constant dense<0.000000e+00> : vector<104x128xf32>
    %78 = tpu.matmul %75, %77, %cst_52 {dimension_numbers = #tpu.dot_dimension_numbers<[1], [0], [0], [1], [0, 0, 1, 1], [], []>} : vector<104x128xbf16>, vector<128x128xbf16>, vector<104x128xf32> -> vector<104x128xf32>
    %c2_53 = arith.constant 2 : index
    %c0_54 = arith.constant 0 : index
    %c0_55 = arith.constant 0 : index
    %79 = vector.load %arg9[%c2_53, %c0_54, %c0_55] : memref<3x1x128xf32, #tpu.memory_space<vmem>>, vector<1x1x128xf32>
    %80 = vector.shape_cast %79 : vector<1x1x128xf32> to vector<1x128xf32>
    %81 = vector.broadcast %80 : vector<1x128xf32> to vector<104x128xf32>
    %82 = arith.addf %78, %81 : vector<104x128xf32>
    %cst_56 = arith.constant 0.000000e+00 : f32
    %83 = vector.broadcast %cst_56 : f32 to vector<104x128xf32>
    %84 = arith.maximumf %82, %83 : vector<104x128xf32>
    %85 = arith.truncf %84 : vector<104x128xf32> to vector<104x128xbf16>
    %c0_57 = arith.constant 0 : index
    %c0_58 = arith.constant 0 : index
    %86 = vector.load %arg10[%c0_57, %c0_58] : memref<128x8xbf16, #tpu.memory_space<vmem>>, vector<128x8xbf16>
    %cst_59 = arith.constant dense<0.000000e+00> : vector<104x8xf32>
    %87 = tpu.matmul %85, %86, %cst_59 {dimension_numbers = #tpu.dot_dimension_numbers<[1], [0], [0], [1], [0, 0, 1, 1], [], []>} : vector<104x128xbf16>, vector<128x8xbf16>, vector<104x8xf32> -> vector<104x8xf32>
    %c0_60 = arith.constant 0 : index
    %c0_61 = arith.constant 0 : index
    %88 = vector.load %arg11[%c0_60, %c0_61] : memref<1x8xf32, #tpu.memory_space<vmem>>, vector<1x8xf32>
    %89 = vector.broadcast %88 : vector<1x8xf32> to vector<104x8xf32>
    %90 = arith.addf %87, %89 : vector<104x8xf32>
    %c0_62 = arith.constant 0 : index
    %c0_63 = arith.constant 0 : index
    %91 = vector.load %arg12[%c0_62, %c0_63] : memref<104x8xf32, #tpu.memory_space<vmem>>, vector<104x8xf32>
    tpu.vector_store %arg12[%c0_62, %c0_63], %90 {strides = array<i32>} : memref<104x8xf32, #tpu.memory_space<vmem>>, vector<104x8xf32>,
    return
  }
  func.func @transform_0(%arg0: i32) -> (i32, i32) {
    %c0_i32 = arith.constant 0 : i32
    %c0_i32_0 = arith.constant 0 : i32
    return %arg0, %c0_i32 : i32, i32
  }
  func.func @transform_1(%arg0: i32) -> (i32, i32) {
    %c0_i32 = arith.constant 0 : i32
    %c0_i32_0 = arith.constant 0 : i32
    return %arg0, %c0_i32 : i32, i32
  }
  func.func @transform_2(%arg0: i32) -> (i32, i32) {
    %c0_i32 = arith.constant 0 : i32
    %c0_i32_0 = arith.constant 0 : i32
    return %arg0, %c0_i32 : i32, i32
  }
  func.func @transform_3(%arg0: i32) -> (i32, i32) {
    %c0_i32 = arith.constant 0 : i32
    %c0_i32_0 = arith.constant 0 : i32
    %c0_i32_1 = arith.constant 0 : i32
    return %c0_i32, %c0_i32_0 : i32, i32
  }
  func.func @transform_4(%arg0: i32) -> (i32, i32) {
    %c0_i32 = arith.constant 0 : i32
    %c0_i32_0 = arith.constant 0 : i32
    %c0_i32_1 = arith.constant 0 : i32
    return %c0_i32, %c0_i32_0 : i32, i32
  }
  func.func @transform_5(%arg0: i32) -> (i32, i32, i32) {
    %c0_i32 = arith.constant 0 : i32
    %c0_i32_0 = arith.constant 0 : i32
    %c0_i32_1 = arith.constant 0 : i32
    %c0_i32_2 = arith.constant 0 : i32
    return %c0_i32, %c0_i32_0, %c0_i32_1 : i32, i32, i32
  }
  func.func @transform_6(%arg0: i32) -> (i32, i32, i32) {
    %c0_i32 = arith.constant 0 : i32
    %c0_i32_0 = arith.constant 0 : i32
    %c0_i32_1 = arith.constant 0 : i32
    %c0_i32_2 = arith.constant 0 : i32
    return %c0_i32, %c0_i32_0, %c0_i32_1 : i32, i32, i32
  }
  func.func @transform_7(%arg0: i32) -> (i32, i32, i32) {
    %c0_i32 = arith.constant 0 : i32
    %c0_i32_0 = arith.constant 0 : i32
    %c0_i32_1 = arith.constant 0 : i32
    %c0_i32_2 = arith.constant 0 : i32
    return %c0_i32, %c0_i32_0, %c0_i32_1 : i32, i32, i32
  }
  func.func @transform_8(%arg0: i32) -> (i32, i32, i32) {
    %c0_i32 = arith.constant 0 : i32
    %c0_i32_0 = arith.constant 0 : i32
    %c0_i32_1 = arith.constant 0 : i32
    %c0_i32_2 = arith.constant 0 : i32
    return %c0_i32, %c0_i32_0, %c0_i32_1 : i32, i32, i32
  }
  func.func @transform_9(%arg0: i32) -> (i32, i32) {
    %c0_i32 = arith.constant 0 : i32
    %c0_i32_0 = arith.constant 0 : i32
    %c0_i32_1 = arith.constant 0 : i32
    return %c0_i32, %c0_i32_0 : i32, i32
  }
  func.func @transform_10(%arg0: i32) -> (i32, i32) {
    %c0_i32 = arith.constant 0 : i32
    %c0_i32_0 = arith.constant 0 : i32
    %c0_i32_1 = arith.constant 0 : i32
    return %c0_i32, %c0_i32_0 : i32, i32
  }
  func.func @transform_11(%arg0: i32) -> (i32, i32) {
    %c0_i32 = arith.constant 0 : i32
    %c0_i32_0 = arith.constant 0 : i32
    return %arg0, %c0_i32 : i32, i32
  }
}

</mosaic_0001>

<llo_original>
// kernel: tpu_custom_call.1
$region0: #{tpu_custom_call.1}
  #allocation0 [shape = 'u32[]', space=smem, size = 0x4, offset = 0x4, fixed_abs, tag = 'smem constant byte address 0x4 - core index']
  #allocation1 [shape = 'u32[144,128]{1,0:T(1,128)}', space=vmem, size = 0x12000, scoped, tag = 'internal scratch']
  %s0 = inlined_call_operand.vmem [shape: f32[100,3], index: 0, kind: input, shape index: {}]
  %s1 = inlined_call_operand.hbm [shape: f32[100,384], index: 1, kind: input, shape index: {}]
  %s2 = inlined_call_operand.hbm [shape: f32[100,384], index: 2, kind: input, shape index: {}]
  %s3 = inlined_call_operand.vmem [shape: f32[3,128], index: 3, kind: input, shape index: {}]
  %s4 = inlined_call_operand.vmem [shape: f32[1,128], index: 4, kind: input, shape index: {}]
  %s5 = inlined_call_operand.hbm [shape: bf16[2,128,128], index: 5, kind: input, shape index: {}]
  %s6 = inlined_call_operand.vmem [shape: f32[2,1,128], index: 6, kind: input, shape index: {}]
  %s7 = inlined_call_operand.vmem [shape: bf16[3,128,128], index: 7, kind: input, shape index: {}]
  %s8 = inlined_call_operand.vmem [shape: f32[3,1,128], index: 8, kind: input, shape index: {}]
  %s9 = inlined_call_operand.vmem [shape: bf16[128,8], index: 9, kind: input, shape index: {}]
  %s10 = inlined_call_operand.vmem [shape: f32[1,8], index: 10, kind: input, shape index: {}]
  %s11 = inlined_call_operand.vmem [shape: f32[100,8], index: 11, kind: output, shape index: {}]
  %s12 = sld [smem:[#allocation0]]
  $region66: #{tpu_custom_call.1} parent=0
    _
  %s14 = ssub.s32 1, %s12
  %s15 = scalar_select 0, %s14, %s12
  $region1: #{tpu_custom_call.1} parent=0
    #allocation2 [shape = 'u8[159744]{0}', space=vmem, size = 0x27000, scoped, tag = 'input window, operand 1, single buffered']
    #allocation3 [shape = 's32[1]{0}', space=sflag, size = 0x4, scoped, tag = 'scoped memory for tpu_custom_call.1']
    #allocation4 [shape = 'u8[159744]{0}', space=vmem, size = 0x27000, scoped, tag = 'input window, operand 2, single buffered']
    #allocation5 [shape = 's32[1]{0}', space=sflag, size = 0x4, scoped, tag = 'scoped memory for tpu_custom_call.1']
    #allocation6 [shape = 'u8[65536]{0}', space=vmem, size = 0x10000, scoped, tag = 'input window, operand 5, single buffered']
    %16 = vsyncpa [#allocation3], 0
    %17 = vsyncpa [#allocation5], 0
    // Predicated region
    $region2: #{tpu_custom_call.1} parent=1 // pred_check
      _
    $region3: #{tpu_custom_call.1} parent=1 // pred_check_branch
      %19 = sbr.rel (0) target = $region5
    $region4: #{tpu_custom_call.1} parent=1 // pred_region
      _
    $region5: #{tpu_custom_call.1} parent=1 // pred_fallthru
      _
    // Predicated region
    $region6: #{tpu_custom_call.1} parent=1 // pred_check
      _
    $region7: #{tpu_custom_call.1} parent=1 // pred_check_branch
      %21 = sbr.rel (0) target = $region9
    $region8: #{tpu_custom_call.1} parent=1 // pred_region
      %s23 = ssub.s32 4992, 4992
      %24 = vsyncadd [#allocation3], %s23
      %s25 = sshll.u32 [#allocation2], 4
      %s26 = int_to_ptr.vmem [resolvable:$true] %s25
      %31 = dma.hbm_to_vmem [thread:$0]  %s1, 4992, %s26, [#allocation3], 384, 384, 24
    $region9: #{tpu_custom_call.1} parent=1 // pred_fallthru
      _
    // Predicated region
    $region10: #{tpu_custom_call.1} parent=1 // pred_check
      _
    $region11: #{tpu_custom_call.1} parent=1 // pred_check_branch
      %33 = sbr.rel (0) target = $region13
    $region12: #{tpu_custom_call.1} parent=1 // pred_region
      %s35 = ssub.s32 4992, 4992
      %36 = vsyncadd [#allocation5], %s35
      %s37 = sshll.u32 [#allocation4], 4
      %s38 = int_to_ptr.vmem [resolvable:$true] %s37
      %43 = dma.hbm_to_vmem [thread:$0]  %s2, 4992, %s38, [#allocation5], 384, 384, 24
    $region13: #{tpu_custom_call.1} parent=1 // pred_fallthru
      _
    // Predicated region
    $region14: #{tpu_custom_call.1} parent=1 // pred_check
      _
    $region15: #{tpu_custom_call.1} parent=1 // pred_check_branch
      %45 = sbr.rel (0) target = $region17
    $region16: #{tpu_custom_call.1} parent=1 // pred_region
      _
    $region17: #{tpu_custom_call.1} parent=1 // pred_fallthru
      _
    // Predicated region
    $region18: #{tpu_custom_call.1} parent=1 // pred_check
      _
    $region19: #{tpu_custom_call.1} parent=1 // pred_check_branch
      %47 = sbr.rel (0) target = $region21
    $region20: #{tpu_custom_call.1} parent=1 // pred_region
      _
    $region21: #{tpu_custom_call.1} parent=1 // pred_fallthru
      _
    // Predicated region
    $region22: #{tpu_custom_call.1} parent=1 // pred_check
      _
    $region23: #{tpu_custom_call.1} parent=1 // pred_check_branch
      %49 = sbr.rel (0) target = $region25
    $region24: #{tpu_custom_call.1} parent=1 // pred_region
      %s51 = ssub.s32 2048, 2048
      %52 = vsyncadd [#allocation5], %s51
      %s53 = sshll.u32 [#allocation6], 4
      %s54 = int_to_ptr.vmem [resolvable:$true] %s53
      %59 = dma.hbm_to_vmem [thread:$0]  %s5, 2048, %s54, [#allocation5], 64, 64, 4
    $region25: #{tpu_custom_call.1} parent=1 // pred_fallthru
      _
    // Predicated region
    $region26: #{tpu_custom_call.1} parent=1 // pred_check
      _
    $region27: #{tpu_custom_call.1} parent=1 // pred_check_branch
      %61 = sbr.rel (0) target = $region29
    $region28: #{tpu_custom_call.1} parent=1 // pred_region
      _
    $region29: #{tpu_custom_call.1} parent=1 // pred_fallthru
      _
    // Predicated region
    $region30: #{tpu_custom_call.1} parent=1 // pred_check
      _
    $region31: #{tpu_custom_call.1} parent=1 // pred_check_branch
      %63 = sbr.rel (0) target = $region33
    $region32: #{tpu_custom_call.1} parent=1 // pred_region
      _
    $region33: #{tpu_custom_call.1} parent=1 // pred_fallthru
      _
    // Predicated region
    $region34: #{tpu_custom_call.1} parent=1 // pred_check
      _
    $region35: #{tpu_custom_call.1} parent=1 // pred_check_branch
      %65 = sbr.rel (0) target = $region37
    $region36: #{tpu_custom_call.1} parent=1 // pred_region
      _
    $region37: #{tpu_custom_call.1} parent=1 // pred_fallthru
      _
    // Predicated region
    $region38: #{tpu_custom_call.1} parent=1 // pred_check
      _
    $region39: #{tpu_custom_call.1} parent=1 // pred_check_branch
      %67 = sbr.rel (0) target = $region41
    $region40: #{tpu_custom_call.1} parent=1 // pred_region
      _
    $region41: #{tpu_custom_call.1} parent=1 // pred_fallthru
      _
    // Predicated region
    $region42: #{tpu_custom_call.1} parent=1 // pred_check
      _
    $region43: #{tpu_custom_call.1} parent=1 // pred_check_branch
      %69 = sbr.rel (0) target = $region45
    $region44: #{tpu_custom_call.1} parent=1 // pred_region
      _
    $region45: #{tpu_custom_call.1} parent=1 // pred_fallthru
      _
    // Predicated region
    $region46: #{tpu_custom_call.1} parent=1 // pred_check
      _
    $region47: #{tpu_custom_call.1} parent=1 // pred_check_branch
      %71 = sbr.rel (0) target = $region49
    $region48: #{tpu_custom_call.1} parent=1 // pred_region
      %72 = dma.done [#allocation3], 4992
    $region49: #{tpu_custom_call.1} parent=1 // pred_fallthru
      _
    // Predicated region
    $region50: #{tpu_custom_call.1} parent=1 // pred_check
      _
    $region51: #{tpu_custom_call.1} parent=1 // pred_check_branch
      %74 = sbr.rel (0) target = $region53
    $region52: #{tpu_custom_call.1} parent=1 // pred_region
      %75 = dma.done [#allocation5], 4992
    $region53: #{tpu_custom_call.1} parent=1 // pred_fallthru
      _
    // Predicated region
    $region54: #{tpu_custom_call.1} parent=1 // pred_check
      _
    $region55: #{tpu_custom_call.1} parent=1 // pred_check_branch
      %77 = sbr.rel (0) target = $region57
    $region56: #{tpu_custom_call.1} parent=1 // pred_region
      %78 = dma.done [#allocation5], 2048
    $region57: #{tpu_custom_call.1} parent=1 // pred_fallthru
      _
    %v80 = vld [vmem:[%s0] sm:$0xff]
    %v81 = vld [vmem:[%s0 + $0x8] sm:$0xff]
    %v82 = vld [vmem:[%s0 + $0x10] sm:$0xff]
    %v83 = vld [vmem:[%s0 + $0x18] sm:$0xff]
    %v84 = vld [vmem:[%s0 + $0x20] sm:$0xff]
    %v85 = vld [vmem:[%s0 + $0x28] sm:$0xff]
    %v86 = vld [vmem:[%s0 + $0x30] sm:$0xff]
    %v87 = vld [vmem:[%s0 + $0x38] sm:$0xff]
    %v88 = vld [vmem:[%s0 + $0x40] sm:$0xff]
    %v89 = vld [vmem:[%s0 + $0x48] sm:$0xff]
    %v90 = vld [vmem:[%s0 + $0x50] sm:$0xff]
    %v91 = vld [vmem:[%s0 + $0x58] sm:$0xff]
    %v92 = vld [vmem:[%s0 + $0x60] sm:$0xff]
    %v93 = vld [vmem:[%s4] sm:$0x1]
    %v94 = vld [vmem:[%s3] sm:$0x1]
    %96 = vset.pattern.permute.xlu0 0
    %97 = vperm.xlu0 %96, %v80
    %v98 = vpop.permute.xlu0 %97
    %101 = vset.pattern.permute.xlu0 0
    %102 = vperm.xlu0 %101, %v81
    %v103 = vpop.permute.xlu0 %102
    %106 = vset.pattern.permute.xlu0 0
    %107 = vperm.xlu0 %106, %v82
    %v108 = vpop.permute.xlu0 %107
    %111 = vset.pattern.permute.xlu0 0
    %112 = vperm.xlu0 %111, %v83
    %v113 = vpop.permute.xlu0 %112
    %116 = vset.pattern.permute.xlu0 0
    %117 = vperm.xlu0 %116, %v84
    %v118 = vpop.permute.xlu0 %117
    %121 = vset.pattern.permute.xlu0 0
    %122 = vperm.xlu0 %121, %v85
    %v123 = vpop.permute.xlu0 %122
    %126 = vset.pattern.permute.xlu0 0
    %127 = vperm.xlu0 %126, %v86
    %v128 = vpop.permute.xlu0 %127
    %131 = vset.pattern.permute.xlu0 0
    %132 = vperm.xlu0 %131, %v87
    %v133 = vpop.permute.xlu0 %132
    %136 = vset.pattern.permute.xlu0 0
    %137 = vperm.xlu0 %136, %v88
    %v138 = vpop.permute.xlu0 %137
    %141 = vset.pattern.permute.xlu0 0
    %142 = vperm.xlu0 %141, %v89
    %v143 = vpop.permute.xlu0 %142
    %146 = vset.pattern.permute.xlu0 0
    %147 = vperm.xlu0 %146, %v90
    %v148 = vpop.permute.xlu0 %147
    %151 = vset.pattern.permute.xlu0 0
    %152 = vperm.xlu0 %151, %v91
    %v153 = vpop.permute.xlu0 %152
    %156 = vset.pattern.permute.xlu0 0
    %157 = vperm.xlu0 %156, %v92
    %v158 = vpop.permute.xlu0 %157
    %v160 = vlaneseq
    %v161 = vshrl.u32 %v160, 7
    %v162 = vsub.s32 0, %v161
    %v163 = vrot.slane %v94, %v162
    %v164 = vmul.f32 %v98, %v163
    %v165 = vmul.f32 %v103, %v163
    %v166 = vmul.f32 %v108, %v163
    %v167 = vmul.f32 %v113, %v163
    %v168 = vmul.f32 %v118, %v163
    %v169 = vmul.f32 %v123, %v163
    %v170 = vmul.f32 %v128, %v163
    %v171 = vmul.f32 %v133, %v163
    %v172 = vmul.f32 %v138, %v163
    %v173 = vmul.f32 %v143, %v163
    %v174 = vmul.f32 %v148, %v163
    %v175 = vmul.f32 %v153, %v163
    %v176 = vmul.f32 %v158, %v163
    %v178 = vlaneseq
    %v179 = vshrl.u32 %v178, 7
    %v180 = vsub.s32 0, %v179
    %v181 = vrot.slane %v93, %v180
    %v183 = vadd.f32 %v181, %v164
    %v184 = vadd.f32 %v181, %v165
    %v185 = vadd.f32 %v181, %v166
    %v186 = vadd.f32 %v181, %v167
    %v187 = vadd.f32 %v181, %v168
    %v188 = vadd.f32 %v181, %v169
    %v189 = vadd.f32 %v181, %v170
    %v190 = vadd.f32 %v181, %v171
    %v191 = vadd.f32 %v181, %v172
    %v192 = vadd.f32 %v181, %v173
    %v193 = vadd.f32 %v181, %v174
    %v194 = vadd.f32 %v181, %v175
    %v195 = vadd.f32 %v181, %v176
    %v196 = vld [vmem:[%s3 + $0x1] sm:$0x1]
    %197 = vset.pattern.permute.xlu0 1
    %198 = vperm.xlu0 %197, %v80
    %v199 = vpop.permute.xlu0 %198
    %201 = vset.pattern.permute.xlu0 1
    %202 = vperm.xlu0 %201, %v81
    %v203 = vpop.permute.xlu0 %202
    %205 = vset.pattern.permute.xlu0 1
    %206 = vperm.xlu0 %205, %v82
    %v207 = vpop.permute.xlu0 %206
    %209 = vset.pattern.permute.xlu0 1
    %210 = vperm.xlu0 %209, %v83
    %v211 = vpop.permute.xlu0 %210
    %213 = vset.pattern.permute.xlu0 1
    %214 = vperm.xlu0 %213, %v84
    %v215 = vpop.permute.xlu0 %214
    %217 = vset.pattern.permute.xlu0 1
    %218 = vperm.xlu0 %217, %v85
    %v219 = vpop.permute.xlu0 %218
    %221 = vset.pattern.permute.xlu0 1
    %222 = vperm.xlu0 %221, %v86
    %v223 = vpop.permute.xlu0 %222
    %225 = vset.pattern.permute.xlu0 1
    %226 = vperm.xlu0 %225, %v87
    %v227 = vpop.permute.xlu0 %226
    %229 = vset.pattern.permute.xlu0 1
    %230 = vperm.xlu0 %229, %v88
    %v231 = vpop.permute.xlu0 %230
    %233 = vset.pattern.permute.xlu0 1
    %234 = vperm.xlu0 %233, %v89
    %v235 = vpop.permute.xlu0 %234
    %237 = vset.pattern.permute.xlu0 1
    %238 = vperm.xlu0 %237, %v90
    %v239 = vpop.permute.xlu0 %238
    %241 = vset.pattern.permute.xlu0 1
    %242 = vperm.xlu0 %241, %v91
    %v243 = vpop.permute.xlu0 %242
    %245 = vset.pattern.permute.xlu0 1
    %246 = vperm.xlu0 %245, %v92
    %v247 = vpop.permute.xlu0 %246
    %v249 = vlaneseq
    %v250 = vshrl.u32 %v249, 7
    %v251 = vsub.s32 0, %v250
    %v252 = vrot.slane %v196, %v251
    %v253 = vmul.f32 %v199, %v252
    %v254 = vmul.f32 %v203, %v252
    %v255 = vmul.f32 %v207, %v252
    %v256 = vmul.f32 %v211, %v252
    %v257 = vmul.f32 %v215, %v252
    %v258 = vmul.f32 %v219, %v252
    %v259 = vmul.f32 %v223, %v252
    %v260 = vmul.f32 %v227, %v252
    %v261 = vmul.f32 %v231, %v252
    %v262 = vmul.f32 %v235, %v252
    %v263 = vmul.f32 %v239, %v252
    %v264 = vmul.f32 %v243, %v252
    %v265 = vmul.f32 %v247, %v252
    %v266 = vadd.f32 %v183, %v253
    %v267 = vadd.f32 %v184, %v254
    %v268 = vadd.f32 %v185, %v255
    %v269 = vadd.f32 %v186, %v256
    %v270 = vadd.f32 %v187, %v257
    %v271 = vadd.f32 %v188, %v258
    %v272 = vadd.f32 %v189, %v259
    %v273 = vadd.f32 %v190, %v260
    %v274 = vadd.f32 %v191, %v261
    %v275 = vadd.f32 %v192, %v262
    %v276 = vadd.f32 %v193, %v263
    %v277 = vadd.f32 %v194, %v264
    %v278 = vadd.f32 %v195, %v265
    %v279 = vld [vmem:[%s3 + $0x2] sm:$0x1]
    %280 = vset.pattern.permute.xlu0 2
    %281 = vperm.xlu0 %280, %v80
    %v282 = vpop.permute.xlu0 %281
    %284 = vset.pattern.permute.xlu0 2
    %285 = vperm.xlu0 %284, %v81
    %v286 = vpop.permute.xlu0 %285
    %288 = vset.pattern.permute.xlu0 2
    %289 = vperm.xlu0 %288, %v82
    %v290 = vpop.permute.xlu0 %289
    %292 = vset.pattern.permute.xlu0 2
    %293 = vperm.xlu0 %292, %v83
    %v294 = vpop.permute.xlu0 %293
    %296 = vset.pattern.permute.xlu0 2
    %297 = vperm.xlu0 %296, %v84
    %v298 = vpop.permute.xlu0 %297
    %300 = vset.pattern.permute.xlu0 2
    %301 = vperm.xlu0 %300, %v85
    %v302 = vpop.permute.xlu0 %301
    %304 = vset.pattern.permute.xlu0 2
    %305 = vperm.xlu0 %304, %v86
    %v306 = vpop.permute.xlu0 %305
    %308 = vset.pattern.permute.xlu0 2
    %309 = vperm.xlu0 %308, %v87
    %v310 = vpop.permute.xlu0 %309
    %312 = vset.pattern.permute.xlu0 2
    %313 = vperm.xlu0 %312, %v88
    %v314 = vpop.permute.xlu0 %313
    %316 = vset.pattern.permute.xlu0 2
    %317 = vperm.xlu0 %316, %v89
    %v318 = vpop.permute.xlu0 %317
    %320 = vset.pattern.permute.xlu0 2
    %321 = vperm.xlu0 %320, %v90
    %v322 = vpop.permute.xlu0 %321
    %324 = vset.pattern.permute.xlu0 2
    %325 = vperm.xlu0 %324, %v91
    %v326 = vpop.permute.xlu0 %325
    %328 = vset.pattern.permute.xlu0 2
    %329 = vperm.xlu0 %328, %v92
    %v330 = vpop.permute.xlu0 %329
    %v332 = vlaneseq
    %v333 = vshrl.u32 %v332, 7
    %v334 = vsub.s32 0, %v333
    %v335 = vrot.slane %v279, %v334
    %v336 = vmul.f32 %v282, %v335
    %v337 = vmul.f32 %v286, %v335
    %v338 = vmul.f32 %v290, %v335
    %v339 = vmul.f32 %v294, %v335
    %v340 = vmul.f32 %v298, %v335
    %v341 = vmul.f32 %v302, %v335
    %v342 = vmul.f32 %v306, %v335
    %v343 = vmul.f32 %v310, %v335
    %v344 = vmul.f32 %v314, %v335
    %v345 = vmul.f32 %v318, %v335
    %v346 = vmul.f32 %v322, %v335
    %v347 = vmul.f32 %v326, %v335
    %v348 = vmul.f32 %v330, %v335
    %v349 = vadd.f32 %v266, %v336
    %v350 = vadd.f32 %v267, %v337
    %v351 = vadd.f32 %v268, %v338
    %v352 = vadd.f32 %v269, %v339
    %v353 = vadd.f32 %v270, %v340
    %v354 = vadd.f32 %v271, %v341
    %v355 = vadd.f32 %v272, %v342
    %v356 = vadd.f32 %v273, %v343
    %v357 = vadd.f32 %v274, %v344
    %v358 = vadd.f32 %v275, %v345
    %v359 = vadd.f32 %v276, %v346
    %v360 = vadd.f32 %v277, %v347
    %v361 = vadd.f32 %v278, %v348
    %v362 = vmax.f32 %v349, 0.0
    %v363 = vmax.f32 %v350, 0.0
    %v364 = vmax.f32 %v351, 0.0
    %v365 = vmax.f32 %v352, 0.0
    %v366 = vmax.f32 %v353, 0.0
    %v367 = vmax.f32 %v354, 0.0
    %v368 = vmax.f32 %v355, 0.0
    %v369 = vmax.f32 %v356, 0.0
    %v370 = vmax.f32 %v357, 0.0
    %v371 = vmax.f32 %v358, 0.0
    %v372 = vmax.f32 %v359, 0.0
    %v373 = vmax.f32 %v360, 0.0
    %v374 = vmax.f32 %v361, 0.0
    %v375 = vld [vmem:[#allocation2] sm:$0xff]
    %v376 = vld [vmem:[#allocation2 + $0x18] sm:$0xff]
    %v377 = vld [vmem:[#allocation2 + $0x30] sm:$0xff]
    %v378 = vld [vmem:[#allocation2 + $0x48] sm:$0xff]
    %v379 = vld [vmem:[#allocation2 + $0x60] sm:$0xff]
    %v380 = vld [vmem:[#allocation2 + $0x78] sm:$0xff]
    %v381 = vld [vmem:[#allocation2 + $0x90] sm:$0xff]
    %v382 = vld [vmem:[#allocation2 + $0xa8] sm:$0xff]
    %v383 = vld [vmem:[#allocation2 + $0xc0] sm:$0xff]
    %v384 = vld [vmem:[#allocation2 + $0xd8] sm:$0xff]
    %v385 = vld [vmem:[#allocation2 + $0xf0] sm:$0xff]
    %v386 = vld [vmem:[#allocation2 + $0x108] sm:$0xff]
    %v387 = vld [vmem:[#allocation2 + $0x120] sm:$0xff]
    %v388 = vld [vmem:[#allocation4] sm:$0xff]
    %v389 = vld [vmem:[#allocation4 + $0x18] sm:$0xff]
    %v390 = vld [vmem:[#allocation4 + $0x30] sm:$0xff]
    %v391 = vld [vmem:[#allocation4 + $0x48] sm:$0xff]
    %v392 = vld [vmem:[#allocation4 + $0x60] sm:$0xff]
    %v393 = vld [vmem:[#allocation4 + $0x78] sm:$0xff]
    %v394 = vld [vmem:[#allocation4 + $0x90] sm:$0xff]
    %v395 = vld [vmem:[#allocation4 + $0xa8] sm:$0xff]
    %v396 = vld [vmem:[#allocation4 + $0xc0] sm:$0xff]
    %v397 = vld [vmem:[#allocation4 + $0xd8] sm:$0xff]
    %v398 = vld [vmem:[#allocation4 + $0xf0] sm:$0xff]
    %v399 = vld [vmem:[#allocation4 + $0x108] sm:$0xff]
    %v400 = vld [vmem:[#allocation4 + $0x120] sm:$0xff]
    %v401 = vmul.f32 %v375, %v362
    %v402 = vmul.f32 %v376, %v363
    %v403 = vmul.f32 %v377, %v364
    %v404 = vmul.f32 %v378, %v365
    %v405 = vmul.f32 %v379, %v366
    %v406 = vmul.f32 %v380, %v367
    %v407 = vmul.f32 %v381, %v368
    %v408 = vmul.f32 %v382, %v369
    %v409 = vmul.f32 %v383, %v370
    %v410 = vmul.f32 %v384, %v371
    %v411 = vmul.f32 %v385, %v372
    %v412 = vmul.f32 %v386, %v373
    %v413 = vmul.f32 %v387, %v374
    %v414 = vadd.f32 %v401, %v388
    %v415 = vadd.f32 %v402, %v389
    %v416 = vadd.f32 %v403, %v390
    %v417 = vadd.f32 %v404, %v391
    %v418 = vadd.f32 %v405, %v392
    %v419 = vadd.f32 %v406, %v393
    %v420 = vadd.f32 %v407, %v394
    %v421 = vadd.f32 %v408, %v395
    %v422 = vadd.f32 %v409, %v396
    %v423 = vadd.f32 %v410, %v397
    %v424 = vadd.f32 %v411, %v398
    %v425 = vadd.f32 %v412, %v399
    %v426 = vadd.f32 %v413, %v400
    %v427 = vpack.c.bf16 %v415, %v414
    %v428 = vpack.c.bf16 %v417, %v416
    %v429 = vpack.c.bf16 %v419, %v418
    %v430 = vpack.c.bf16 %v421, %v420
    %v431 = vpack.c.bf16 %v423, %v422
    %v432 = vpack.c.bf16 %v425, %v424
    %v433 = vpack.c.bf16 %v426, %v426
    %v434 = vld [vmem:[#allocation6] sm:$0xf]
    %v435 = vld [vmem:[#allocation6 + $0x4] sm:$0xf]
    %v436 = vld [vmem:[#allocation6 + $0x8] sm:$0xf]
    %v437 = vld [vmem:[#allocation6 + $0xc] sm:$0xf]
    %v438 = vld [vmem:[#allocation6 + $0x10] sm:$0xf]
    %v439 = vld [vmem:[#allocation6 + $0x14] sm:$0xf]
    %v440 = vld [vmem:[#allocation6 + $0x18] sm:$0xf]
    %v441 = vld [vmem:[#allocation6 + $0x1c] sm:$0xf]
    %v442 = vld [vmem:[#allocation6 + $0x20] sm:$0xf]
    %v443 = vld [vmem:[#allocation6 + $0x24] sm:$0xf]
    %v444 = vld [vmem:[#allocation6 + $0x28] sm:$0xf]
    %v445 = vld [vmem:[#allocation6 + $0x2c] sm:$0xf]
    %v446 = vld [vmem:[#allocation6 + $0x30] sm:$0xf]
    %v447 = vld [vmem:[#allocation6 + $0x34] sm:$0xf]
    %v448 = vld [vmem:[#allocation6 + $0x38] sm:$0xf]
    %v449 = vld [vmem:[#allocation6 + $0x3c] sm:$0xf]
    %v450 = vld [vmem:[%s6] sm:$0x1]
    %v452 = vlaneseq
    %v453 = vshrl.u32 %v452, 7
    %v454 = vsub.s32 0, %v453
    %v455 = vrot.slane %v450, %v454
    %v473 = vunpack.c.l.b16 %v434
    %v474 = vunpack.c.l.b16 %v435
    %v475 = vunpack.c.l.b16 %v436
    %v476 = vunpack.c.l.b16 %v437
    %v477 = vunpack.c.l.b16 %v438
    %v478 = vunpack.c.l.b16 %v439
    %v479 = vunpack.c.l.b16 %v440
    %v480 = vunpack.c.l.b16 %v441
    %v481 = vunpack.c.l.b16 %v442
    %v482 = vunpack.c.l.b16 %v443
    %v483 = vunpack.c.l.b16 %v444
    %v484 = vunpack.c.l.b16 %v445
    %v485 = vunpack.c.l.b16 %v446
    %v486 = vunpack.c.l.b16 %v447
    %v487 = vunpack.c.l.b16 %v448
    %v488 = vunpack.c.l.b16 %v449
    %v489 = vpack.c.b16 %v474, %v473
    %v490 = vpack.c.b16 %v476, %v475
    %v491 = vpack.c.b16 %v478, %v477
    %v492 = vpack.c.b16 %v480, %v479
    %v493 = vpack.c.b16 %v482, %v481
    %v494 = vpack.c.b16 %v484, %v483
    %v495 = vpack.c.b16 %v486, %v485
    %v496 = vpack.c.b16 %v488, %v487
    %505 = vmatprep.subr.bf16.mxu0 0
    %506 = vmatpush1.bf16.msra.mxu0 %v489
    %507 = vmatprep.subr.bf16.mxu0 0
    %508 = vmatpush1.bf16.msra.mxu0 %v490
    %509 = vmatprep.subr.bf16.mxu0 0
    %510 = vmatpush1.bf16.msra.mxu0 %v491
    %511 = vmatprep.subr.bf16.mxu0 0
    %512 = vmatpush1.bf16.msra.mxu0 %v492
    %513 = vmatprep.subr.bf16.mxu0 0
    %514 = vmatpush1.bf16.msra.mxu0 %v493
    %515 = vmatprep.subr.bf16.mxu0 0
    %516 = vmatpush1.bf16.msra.mxu0 %v494
    %517 = vmatprep.subr.bf16.mxu0 0
    %518 = vmatpush1.bf16.msra.mxu0 %v495
    %519 = vmatprep.subr.bf16.mxu0 0
    %520 = vmatpush1.bf16.msra.mxu0 %v496
    %521 = vmatprep.subr.bf16.mxu0 0
    %522 = vmatpush1.bf16.msra.mxu0 0
    %523 = vmatprep.subr.bf16.mxu0 0
    %524 = vmatpush1.bf16.msra.mxu0 0
    %525 = vmatprep.subr.bf16.mxu0 0
    %526 = vmatpush1.bf16.msra.mxu0 0
    %527 = vmatprep.subr.bf16.mxu0 0
    %528 = vmatpush1.bf16.msra.mxu0 0
    %529 = vmatprep.subr.bf16.mxu0 0
    %530 = vmatpush1.bf16.msra.mxu0 0
    %531 = vmatprep.subr.bf16.mxu0 0
    %532 = vmatpush1.bf16.msra.mxu0 0
    %533 = vmatprep.subr.bf16.mxu0 0
    %534 = vmatpush1.bf16.msra.mxu0 0
    %535 = vmatprep.subr.bf16.mxu0 0
    %536 = vmatpush1.bf16.msra.mxu0 0
    %537 = vmatprep.mubr.bf16.mxu0 0
    %538 = vmatmul.mubr.bf16.gmra.mrb[0].mxu0 %v427
    %v539 = vpop.f32.mrb[0].mxu0
    %v540 = vadd.f32 %v455, %v539
    %v541 = vpop.f32.mrb[0].mxu0
    %v542 = vpop.f32.mrb[0].mxu0
    %v543 = vadd.f32 %v455, %v542
    %v544 = vpop.f32.mrb[0].mxu0
    %545 = vmatprep.mubr.bf16.mxu0 0
    %546 = vmatmul.mubr.bf16.gmra.mrb[0].mxu0 %v428
    %v547 = vpop.f32.mrb[0].mxu0
    %v548 = vadd.f32 %v455, %v547
    %v549 = vpop.f32.mrb[0].mxu0
    %v550 = vpop.f32.mrb[0].mxu0
    %v551 = vadd.f32 %v455, %v550
    %v552 = vpop.f32.mrb[0].mxu0
    %553 = vmatprep.mubr.bf16.mxu0 0
    %554 = vmatmul.mubr.bf16.gmra.mrb[0].mxu0 %v429
    %v555 = vpop.f32.mrb[0].mxu0
    %v556 = vadd.f32 %v455, %v555
    %v557 = vpop.f32.mrb[0].mxu0
    %v558 = vpop.f32.mrb[0].mxu0
    %v559 = vadd.f32 %v455, %v558
    %v560 = vpop.f32.mrb[0].mxu0
    %561 = vmatprep.mubr.bf16.mxu0 0
    %562 = vmatmul.mubr.bf16.gmra.mrb[0].mxu0 %v430
    %v563 = vpop.f32.mrb[0].mxu0
    %v564 = vadd.f32 %v455, %v563
    %v565 = vpop.f32.mrb[0].mxu0
    %v566 = vpop.f32.mrb[0].mxu0
    %v567 = vadd.f32 %v455, %v566
    %v568 = vpop.f32.mrb[0].mxu0
    %569 = vmatprep.mubr.bf16.mxu0 0
    %570 = vmatmul.mubr.bf16.gmra.mrb[0].mxu0 %v431
    %v571 = vpop.f32.mrb[0].mxu0
    %v572 = vadd.f32 %v455, %v571
    %v573 = vpop.f32.mrb[0].mxu0
    %v574 = vpop.f32.mrb[0].mxu0
    %v575 = vadd.f32 %v455, %v574
    %v576 = vpop.f32.mrb[0].mxu0
    %577 = vmatprep.mubr.bf16.mxu0 0
    %578 = vmatmul.mubr.bf16.gmra.mrb[0].mxu0 %v432
    %v579 = vpop.f32.mrb[0].mxu0
    %v580 = vadd.f32 %v455, %v579
    %v581 = vpop.f32.mrb[0].mxu0
    %v582 = vpop.f32.mrb[0].mxu0
    %v583 = vadd.f32 %v455, %v582
    %v584 = vpop.f32.mrb[0].mxu0
    %585 = vmatprep.mubr.bf16.mxu0 0
    %586 = vmatmul.mubr.bf16.gmra.mrb[0].mxu0 %v433
    %v587 = vpop.f32.mrb[0].mxu0
    %v588 = vadd.f32 %v455, %v587
    %v589 = vpop.f32.mrb[0].mxu0
    %v590 = vpop.f32.mrb[0].mxu0
    %v591 = vpop.f32.mrb[0].mxu0
    %592 = vdwg.mxu0
    %v593 = vmax.f32 %v540, 0.0
    %v594 = vmax.f32 %v543, 0.0
    %v595 = vmax.f32 %v548, 0.0
    %v596 = vmax.f32 %v551, 0.0
    %v597 = vmax.f32 %v556, 0.0
    %v598 = vmax.f32 %v559, 0.0
    %v599 = vmax.f32 %v564, 0.0
    %v600 = vmax.f32 %v567, 0.0
    %v601 = vmax.f32 %v572, 0.0
    %v602 = vmax.f32 %v575, 0.0
    %v603 = vmax.f32 %v580, 0.0
    %v604 = vmax.f32 %v583, 0.0
    %v605 = vmax.f32 %v588, 0.0
    %v606 = vld [vmem:[#allocation2 + $0x8] sm:$0xff]
    %v607 = vld [vmem:[#allocation2 + $0x20] sm:$0xff]
    %v608 = vld [vmem:[#allocation2 + $0x38] sm:$0xff]
    %v609 = vld [vmem:[#allocation2 + $0x50] sm:$0xff]
    %v610 = vld [vmem:[#allocation2 + $0x68] sm:$0xff]
    %v611 = vld [vmem:[#allocation2 + $0x80] sm:$0xff]
    %v612 = vld [vmem:[#allocation2 + $0x98] sm:$0xff]
    %v613 = vld [vmem:[#allocation2 + $0xb0] sm:$0xff]
    %v614 = vld [vmem:[#allocation2 + $0xc8] sm:$0xff]
    %v615 = vld [vmem:[#allocation2 + $0xe0] sm:$0xff]
    %v616 = vld [vmem:[#allocation2 + $0xf8] sm:$0xff]
    %v617 = vld [vmem:[#allocation2 + $0x110] sm:$0xff]
    %v618 = vld [vmem:[#allocation2 + $0x128] sm:$0xff]
    %v619 = vld [vmem:[#allocation4 + $0x8] sm:$0xff]
    %v620 = vld [vmem:[#allocation4 + $0x20] sm:$0xff]
    %v621 = vld [vmem:[#allocation4 + $0x38] sm:$0xff]
    %v622 = vld [vmem:[#allocation4 + $0x50] sm:$0xff]
    %v623 = vld [vmem:[#allocation4 + $0x68] sm:$0xff]
    %v624 = vld [vmem:[#allocation4 + $0x80] sm:$0xff]
    %v625 = vld [vmem:[#allocation4 + $0x98] sm:$0xff]
    %v626 = vld [vmem:[#allocation4 + $0xb0] sm:$0xff]
    %v627 = vld [vmem:[#allocation4 + $0xc8] sm:$0xff]
    %v628 = vld [vmem:[#allocation4 + $0xe0] sm:$0xff]
    %v629 = vld [vmem:[#allocation4 + $0xf8] sm:$0xff]
    %v630 = vld [vmem:[#allocation4 + $0x110] sm:$0xff]
    %v631 = vld [vmem:[#allocation4 + $0x128] sm:$0xff]
    %v632 = vmul.f32 %v606, %v593
    %v633 = vmul.f32 %v607, %v594
    %v634 = vmul.f32 %v608, %v595
    %v635 = vmul.f32 %v609, %v596
    %v636 = vmul.f32 %v610, %v597
    %v637 = vmul.f32 %v611, %v598
    %v638 = vmul.f32 %v612, %v599
    %v639 = vmul.f32 %v613, %v600
    %v640 = vmul.f32 %v614, %v601
    %v641 = vmul.f32 %v615, %v602
    %v642 = vmul.f32 %v616, %v603
    %v643 = vmul.f32 %v617, %v604
    %v644 = vmul.f32 %v618, %v605
    %v645 = vadd.f32 %v632, %v619
    %v646 = vadd.f32 %v633, %v620
    %v647 = vadd.f32 %v634, %v621
    %v648 = vadd.f32 %v635, %v622
    %v649 = vadd.f32 %v636, %v623
    %v650 = vadd.f32 %v637, %v624
    %v651 = vadd.f32 %v638, %v625
    %v652 = vadd.f32 %v639, %v626
    %v653 = vadd.f32 %v640, %v627
    %v654 = vadd.f32 %v641, %v628
    %v655 = vadd.f32 %v642, %v629
    %v656 = vadd.f32 %v643, %v630
    %v657 = vadd.f32 %v644, %v631
    %v658 = vpack.c.bf16 %v646, %v645
    %v659 = vpack.c.bf16 %v648, %v647
    %v660 = vpack.c.bf16 %v650, %v649
    %v661 = vpack.c.bf16 %v652, %v651
    %v662 = vpack.c.bf16 %v654, %v653
    %v663 = vpack.c.bf16 %v656, %v655
    %v664 = vpack.c.bf16 %v657, %v657
    %s665 = scalar_lea.vmem [#allocation6], 64
    %v666 = vld [vmem:[%s665] sm:$0xf]
    %v667 = vld [vmem:[%s665 + $0x4] sm:$0xf]
    %v668 = vld [vmem:[%s665 + $0x8] sm:$0xf]
    %v669 = vld [vmem:[%s665 + $0xc] sm:$0xf]
    %v670 = vld [vmem:[%s665 + $0x10] sm:$0xf]
    %v671 = vld [vmem:[%s665 + $0x14] sm:$0xf]
    %v672 = vld [vmem:[%s665 + $0x18] sm:$0xf]
    %v673 = vld [vmem:[%s665 + $0x1c] sm:$0xf]
    %v674 = vld [vmem:[%s665 + $0x20] sm:$0xf]
    %v675 = vld [vmem:[%s665 + $0x24] sm:$0xf]
    %v676 = vld [vmem:[%s665 + $0x28] sm:$0xf]
    %v677 = vld [vmem:[%s665 + $0x2c] sm:$0xf]
    %v678 = vld [vmem:[%s665 + $0x30] sm:$0xf]
    %v679 = vld [vmem:[%s665 + $0x34] sm:$0xf]
    %v680 = vld [vmem:[%s665 + $0x38] sm:$0xf]
    %v681 = vld [vmem:[%s665 + $0x3c] sm:$0xf]
    %s682 = scalar_lea.vmem %s6, 1
    %v683 = vld [vmem:[%s682] sm:$0x1]
    %v685 = vlaneseq
    %v686 = vshrl.u32 %v685, 7
    %v687 = vsub.s32 0, %v686
    %v688 = vrot.slane %v683, %v687
    %v706 = vunpack.c.l.b16 %v666
    %v707 = vunpack.c.l.b16 %v667
    %v708 = vunpack.c.l.b16 %v668
    %v709 = vunpack.c.l.b16 %v669
    %v710 = vunpack.c.l.b16 %v670
    %v711 = vunpack.c.l.b16 %v671
    %v712 = vunpack.c.l.b16 %v672
    %v713 = vunpack.c.l.b16 %v673
    %v714 = vunpack.c.l.b16 %v674
    %v715 = vunpack.c.l.b16 %v675
    %v716 = vunpack.c.l.b16 %v676
    %v717 = vunpack.c.l.b16 %v677
    %v718 = vunpack.c.l.b16 %v678
    %v719 = vunpack.c.l.b16 %v679
    %v720 = vunpack.c.l.b16 %v680
    %v721 = vunpack.c.l.b16 %v681
    %v722 = vpack.c.b16 %v707, %v706
    %v723 = vpack.c.b16 %v709, %v708
    %v724 = vpack.c.b16 %v711, %v710
    %v725 = vpack.c.b16 %v713, %v712
    %v726 = vpack.c.b16 %v715, %v714
    %v727 = vpack.c.b16 %v717, %v716
    %v728 = vpack.c.b16 %v719, %v718
    %v729 = vpack.c.b16 %v721, %v720
    %738 = vmatprep.subr.bf16.mxu0 0
    %739 = vmatpush1.bf16.msra.mxu0 %v722
    %740 = vmatprep.subr.bf16.mxu0 0
    %741 = vmatpush1.bf16.msra.mxu0 %v723
    %742 = vmatprep.subr.bf16.mxu0 0
    %743 = vmatpush1.bf16.msra.mxu0 %v724
    %744 = vmatprep.subr.bf16.mxu0 0
    %745 = vmatpush1.bf16.msra.mxu0 %v725
    %746 = vmatprep.subr.bf16.mxu0 0
    %747 = vmatpush1.bf16.msra.mxu0 %v726
    %748 = vmatprep.subr.bf16.mxu0 0
    %749 = vmatpush1.bf16.msra.mxu0 %v727
    %750 = vmatprep.subr.bf16.mxu0 0
    %751 = vmatpush1.bf16.msra.mxu0 %v728
    %752 = vmatprep.subr.bf16.mxu0 0
    %753 = vmatpush1.bf16.msra.mxu0 %v729
    %754 = vmatprep.subr.bf16.mxu0 0
    %755 = vmatpush1.bf16.msra.mxu0 0
    %756 = vmatprep.subr.bf16.mxu0 0
    %757 = vmatpush1.bf16.msra.mxu0 0
    %758 = vmatprep.subr.bf16.mxu0 0
    %759 = vmatpush1.bf16.msra.mxu0 0
    %760 = vmatprep.subr.bf16.mxu0 0
    %761 = vmatpush1.bf16.msra.mxu0 0
    %762 = vmatprep.subr.bf16.mxu0 0
    %763 = vmatpush1.bf16.msra.mxu0 0
    %764 = vmatprep.subr.bf16.mxu0 0
    %765 = vmatpush1.bf16.msra.mxu0 0
    %766 = vmatprep.subr.bf16.mxu0 0
    %767 = vmatpush1.bf16.msra.mxu0 0
    %768 = vmatprep.subr.bf16.mxu0 0
    %769 = vmatpush1.bf16.msra.mxu0 0
    %770 = vmatprep.mubr.bf16.mxu0 0
    %771 = vmatmul.mubr.bf16.gmra.mrb[0].mxu0 %v658
    %v772 = vpop.f32.mrb[0].mxu0
    %v773 = vadd.f32 %v688, %v772
    %v774 = vpop.f32.mrb[0].mxu0
    %v775 = vpop.f32.mrb[0].mxu0
    %v776 = vadd.f32 %v688, %v775
    %v777 = vpop.f32.mrb[0].mxu0
    %778 = vmatprep.mubr.bf16.mxu0 0
    %779 = vmatmul.mubr.bf16.gmra.mrb[0].mxu0 %v659
    %v780 = vpop.f32.mrb[0].mxu0
    %v781 = vadd.f32 %v688, %v780
    %v782 = vpop.f32.mrb[0].mxu0
    %v783 = vpop.f32.mrb[0].mxu0
    %v784 = vadd.f32 %v688, %v783
    %v785 = vpop.f32.mrb[0].mxu0
    %786 = vmatprep.mubr.bf16.mxu0 0
    %787 = vmatmul.mubr.bf16.gmra.mrb[0].mxu0 %v660
    %v788 = vpop.f32.mrb[0].mxu0
    %v789 = vadd.f32 %v688, %v788
    %v790 = vpop.f32.mrb[0].mxu0
    %v791 = vpop.f32.mrb[0].mxu0
    %v792 = vadd.f32 %v688, %v791
    %v793 = vpop.f32.mrb[0].mxu0
    %794 = vmatprep.mubr.bf16.mxu0 0
    %795 = vmatmul.mubr.bf16.gmra.mrb[0].mxu0 %v661
    %v796 = vpop.f32.mrb[0].mxu0
    %v797 = vadd.f32 %v688, %v796
    %v798 = vpop.f32.mrb[0].mxu0
    %v799 = vpop.f32.mrb[0].mxu0
    %v800 = vadd.f32 %v688, %v799
    %v801 = vpop.f32.mrb[0].mxu0
    %802 = vmatprep.mubr.bf16.mxu0 0
    %803 = vmatmul.mubr.bf16.gmra.mrb[0].mxu0 %v662
    %v804 = vpop.f32.mrb[0].mxu0
    %v805 = vadd.f32 %v688, %v804
    %v806 = vpop.f32.mrb[0].mxu0
    %v807 = vpop.f32.mrb[0].mxu0
    %v808 = vadd.f32 %v688, %v807
    %v809 = vpop.f32.mrb[0].mxu0
    %810 = vmatprep.mubr.bf16.mxu0 0
    %811 = vmatmul.mubr.bf16.gmra.mrb[0].mxu0 %v663
    %v812 = vpop.f32.mrb[0].mxu0
    %v813 = vadd.f32 %v688, %v812
    %v814 = vpop.f32.mrb[0].mxu0
    %v815 = vpop.f32.mrb[0].mxu0
    %v816 = vadd.f32 %v688, %v815
    %v817 = vpop.f32.mrb[0].mxu0
    %818 = vmatprep.mubr.bf16.mxu0 0
    %819 = vmatmul.mubr.bf16.gmra.mrb[0].mxu0 %v664
    %v820 = vpop.f32.mrb[0].mxu0
    %v821 = vadd.f32 %v688, %v820
    %v822 = vpop.f32.mrb[0].mxu0
    %v823 = vpop.f32.mrb[0].mxu0
    %v824 = vpop.f32.mrb[0].mxu0
    %825 = vdwg.mxu0
    %v826 = vmax.f32 %v773, 0.0
    %v827 = vmax.f32 %v776, 0.0
    %v828 = vmax.f32 %v781, 0.0
    %v829 = vmax.f32 %v784, 0.0
    %v830 = vmax.f32 %v789, 0.0
    %v831 = vmax.f32 %v792, 0.0
    %v832 = vmax.f32 %v797, 0.0
    %v833 = vmax.f32 %v800, 0.0
    %v834 = vmax.f32 %v805, 0.0
    %v835 = vmax.f32 %v808, 0.0
    %v836 = vmax.f32 %v813, 0.0
    %v837 = vmax.f32 %v816, 0.0
    %v838 = vmax.f32 %v821, 0.0
    %v839 = vld [vmem:[#allocation2 + $0x10] sm:$0xff]
    %v840 = vld [vmem:[#allocation2 + $0x28] sm:$0xff]
    %v841 = vld [vmem:[#allocation2 + $0x40] sm:$0xff]
    %v842 = vld [vmem:[#allocation2 + $0x58] sm:$0xff]
    %v843 = vld [vmem:[#allocation2 + $0x70] sm:$0xff]
    %v844 = vld [vmem:[#allocation2 + $0x88] sm:$0xff]
    %v845 = vld [vmem:[#allocation2 + $0xa0] sm:$0xff]
    %v846 = vld [vmem:[#allocation2 + $0xb8] sm:$0xff]
    %v847 = vld [vmem:[#allocation2 + $0xd0] sm:$0xff]
    %v848 = vld [vmem:[#allocation2 + $0xe8] sm:$0xff]
    %v849 = vld [vmem:[#allocation2 + $0x100] sm:$0xff]
    %v850 = vld [vmem:[#allocation2 + $0x118] sm:$0xff]
    %v851 = vld [vmem:[#allocation2 + $0x130] sm:$0xff]
    %v852 = vld [vmem:[#allocation4 + $0x10] sm:$0xff]
    %v853 = vld [vmem:[#allocation4 + $0x28] sm:$0xff]
    %v854 = vld [vmem:[#allocation4 + $0x40] sm:$0xff]
    %v855 = vld [vmem:[#allocation4 + $0x58] sm:$0xff]
    %v856 = vld [vmem:[#allocation4 + $0x70] sm:$0xff]
    %v857 = vld [vmem:[#allocation4 + $0x88] sm:$0xff]
    %v858 = vld [vmem:[#allocation4 + $0xa0] sm:$0xff]
    %v859 = vld [vmem:[#allocation4 + $0xb8] sm:$0xff]
    %v860 = vld [vmem:[#allocation4 + $0xd0] sm:$0xff]
    %v861 = vld [vmem:[#allocation4 + $0xe8] sm:$0xff]
    %v862 = vld [vmem:[#allocation4 + $0x100] sm:$0xff]
    %v863 = vld [vmem:[#allocation4 + $0x118] sm:$0xff]
    %v864 = vld [vmem:[#allocation4 + $0x130] sm:$0xff]
    %v865 = vmul.f32 %v839, %v826
    %v866 = vmul.f32 %v840, %v827
    %v867 = vmul.f32 %v841, %v828
    %v868 = vmul.f32 %v842, %v829
    %v869 = vmul.f32 %v843, %v830
    %v870 = vmul.f32 %v844, %v831
    %v871 = vmul.f32 %v845, %v832
    %v872 = vmul.f32 %v846, %v833
    %v873 = vmul.f32 %v847, %v834
    %v874 = vmul.f32 %v848, %v835
    %v875 = vmul.f32 %v849, %v836
    %v876 = vmul.f32 %v850, %v837
    %v877 = vmul.f32 %v851, %v838
    %v878 = vadd.f32 %v865, %v852
    %v879 = vadd.f32 %v866, %v853
    %v880 = vadd.f32 %v867, %v854
    %v881 = vadd.f32 %v868, %v855
    %v882 = vadd.f32 %v869, %v856
    %v883 = vadd.f32 %v870, %v857
    %v884 = vadd.f32 %v871, %v858
    %v885 = vadd.f32 %v872, %v859
    %v886 = vadd.f32 %v873, %v860
    %v887 = vadd.f32 %v874, %v861
    %v888 = vadd.f32 %v875, %v862
    %v889 = vadd.f32 %v876, %v863
    %v890 = vadd.f32 %v877, %v864
    %v891 = vpack.c.bf16 %v879, %v878
    %v892 = vpack.c.bf16 %v881, %v880
    %v893 = vpack.c.bf16 %v883, %v882
    %v894 = vpack.c.bf16 %v885, %v884
    %v895 = vpack.c.bf16 %v887, %v886
    %v896 = vpack.c.bf16 %v889, %v888
    %v897 = vpack.c.bf16 %v890, %v890
    %v898 = vld [vmem:[%s7] sm:$0xf]
    %v899 = vld [vmem:[%s7 + $0x4] sm:$0xf]
    %v900 = vld [vmem:[%s7 + $0x8] sm:$0xf]
    %v901 = vld [vmem:[%s7 + $0xc] sm:$0xf]
    %v902 = vld [vmem:[%s7 + $0x10] sm:$0xf]
    %v903 = vld [vmem:[%s7 + $0x14] sm:$0xf]
    %v904 = vld [vmem:[%s7 + $0x18] sm:$0xf]
    %v905 = vld [vmem:[%s7 + $0x1c] sm:$0xf]
    %v906 = vld [vmem:[%s7 + $0x20] sm:$0xf]
    %v907 = vld [vmem:[%s7 + $0x24] sm:$0xf]
    %v908 = vld [vmem:[%s7 + $0x28] sm:$0xf]
    %v909 = vld [vmem:[%s7 + $0x2c] sm:$0xf]
    %v910 = vld [vmem:[%s7 + $0x30] sm:$0xf]
    %v911 = vld [vmem:[%s7 + $0x34] sm:$0xf]
    %v912 = vld [vmem:[%s7 + $0x38] sm:$0xf]
    %v913 = vld [vmem:[%s7 + $0x3c] sm:$0xf]
    %v914 = vld [vmem:[%s8] sm:$0x1]
    %v916 = vlaneseq
    %v917 = vshrl.u32 %v916, 7
    %v918 = vsub.s32 0, %v917
    %v919 = vrot.slane %v914, %v918
    %v937 = vunpack.c.l.b16 %v898
    %v938 = vunpack.c.l.b16 %v899
    %v939 = vunpack.c.l.b16 %v900
    %v940 = vunpack.c.l.b16 %v901
    %v941 = vunpack.c.l.b16 %v902
    %v942 = vunpack.c.l.b16 %v903
    %v943 = vunpack.c.l.b16 %v904
    %v944 = vunpack.c.l.b16 %v905
    %v945 = vunpack.c.l.b16 %v906
    %v946 = vunpack.c.l.b16 %v907
    %v947 = vunpack.c.l.b16 %v908
    %v948 = vunpack.c.l.b16 %v909
    %v949 = vunpack.c.l.b16 %v910
    %v950 = vunpack.c.l.b16 %v911
    %v951 = vunpack.c.l.b16 %v912
    %v952 = vunpack.c.l.b16 %v913
    %v953 = vpack.c.b16 %v938, %v937
    %v954 = vpack.c.b16 %v940, %v939
    %v955 = vpack.c.b16 %v942, %v941
    %v956 = vpack.c.b16 %v944, %v943
    %v957 = vpack.c.b16 %v946, %v945
    %v958 = vpack.c.b16 %v948, %v947
    %v959 = vpack.c.b16 %v950, %v949
    %v960 = vpack.c.b16 %v952, %v951
    %969 = vmatprep.subr.bf16.mxu0 0
    %970 = vmatpush1.bf16.msra.mxu0 %v953
    %971 = vmatprep.subr.bf16.mxu0 0
    %972 = vmatpush1.bf16.msra.mxu0 %v954
    %973 = vmatprep.subr.bf16.mxu0 0
    %974 = vmatpush1.bf16.msra.mxu0 %v955
    %975 = vmatprep.subr.bf16.mxu0 0
    %976 = vmatpush1.bf16.msra.mxu0 %v956
    %977 = vmatprep.subr.bf16.mxu0 0
    %978 = vmatpush1.bf16.msra.mxu0 %v957
    %979 = vmatprep.subr.bf16.mxu0 0
    %980 = vmatpush1.bf16.msra.mxu0 %v958
    %981 = vmatprep.subr.bf16.mxu0 0
    %982 = vmatpush1.bf16.msra.mxu0 %v959
    %983 = vmatprep.subr.bf16.mxu0 0
    %984 = vmatpush1.bf16.msra.mxu0 %v960
    %985 = vmatprep.subr.bf16.mxu0 0
    %986 = vmatpush1.bf16.msra.mxu0 0
    %987 = vmatprep.subr.bf16.mxu0 0
    %988 = vmatpush1.bf16.msra.mxu0 0
    %989 = vmatprep.subr.bf16.mxu0 0
    %990 = vmatpush1.bf16.msra.mxu0 0
    %991 = vmatprep.subr.bf16.mxu0 0
    %992 = vmatpush1.bf16.msra.mxu0 0
    %993 = vmatprep.subr.bf16.mxu0 0
    %994 = vmatpush1.bf16.msra.mxu0 0
    %995 = vmatprep.subr.bf16.mxu0 0
    %996 = vmatpush1.bf16.msra.mxu0 0
    %997 = vmatprep.subr.bf16.mxu0 0
    %998 = vmatpush1.bf16.msra.mxu0 0
    %999 = vmatprep.subr.bf16.mxu0 0
    %1000 = vmatpush1.bf16.msra.mxu0 0
    %1001 = vmatprep.mubr.bf16.mxu0 0
    %1002 = vmatmul.mubr.bf16.gmra.mrb[0].mxu0 %v891
    %v1003 = vpop.f32.mrb[0].mxu0
    %v1004 = vadd.f32 %v919, %v1003
    %v1005 = vpop.f32.mrb[0].mxu0
    %v1006 = vpop.f32.mrb[0].mxu0
    %v1007 = vadd.f32 %v919, %v1006
    %v1008 = vpop.f32.mrb[0].mxu0
    %1009 = vmatprep.mubr.bf16.mxu0 0
    %1010 = vmatmul.mubr.bf16.gmra.mrb[0].mxu0 %v892
    %v1011 = vpop.f32.mrb[0].mxu0
    %v1012 = vadd.f32 %v919, %v1011
    %v1013 = vpop.f32.mrb[0].mxu0
    %v1014 = vpop.f32.mrb[0].mxu0
    %v1015 = vadd.f32 %v919, %v1014
    %v1016 = vpop.f32.mrb[0].mxu0
    %1017 = vmatprep.mubr.bf16.mxu0 0
    %1018 = vmatmul.mubr.bf16.gmra.mrb[0].mxu0 %v893
    %v1019 = vpop.f32.mrb[0].mxu0
    %v1020 = vadd.f32 %v919, %v1019
    %v1021 = vpop.f32.mrb[0].mxu0
    %v1022 = vpop.f32.mrb[0].mxu0
    %v1023 = vadd.f32 %v919, %v1022
    %v1024 = vpop.f32.mrb[0].mxu0
    %1025 = vmatprep.mubr.bf16.mxu0 0
    %1026 = vmatmul.mubr.bf16.gmra.mrb[0].mxu0 %v894
    %v1027 = vpop.f32.mrb[0].mxu0
    %v1028 = vadd.f32 %v919, %v1027
    %v1029 = vpop.f32.mrb[0].mxu0
    %v1030 = vpop.f32.mrb[0].mxu0
    %v1031 = vadd.f32 %v919, %v1030
    %v1032 = vpop.f32.mrb[0].mxu0
    %1033 = vmatprep.mubr.bf16.mxu0 0
    %1034 = vmatmul.mubr.bf16.gmra.mrb[0].mxu0 %v895
    %v1035 = vpop.f32.mrb[0].mxu0
    %v1036 = vadd.f32 %v919, %v1035
    %v1037 = vpop.f32.mrb[0].mxu0
    %v1038 = vpop.f32.mrb[0].mxu0
    %v1039 = vadd.f32 %v919, %v1038
    %v1040 = vpop.f32.mrb[0].mxu0
    %1041 = vmatprep.mubr.bf16.mxu0 0
    %1042 = vmatmul.mubr.bf16.gmra.mrb[0].mxu0 %v896
    %v1043 = vpop.f32.mrb[0].mxu0
    %v1044 = vadd.f32 %v919, %v1043
    %v1045 = vpop.f32.mrb[0].mxu0
    %v1046 = vpop.f32.mrb[0].mxu0
    %v1047 = vadd.f32 %v919, %v1046
    %v1048 = vpop.f32.mrb[0].mxu0
    %1049 = vmatprep.mubr.bf16.mxu0 0
    %1050 = vmatmul.mubr.bf16.gmra.mrb[0].mxu0 %v897
    %v1051 = vpop.f32.mrb[0].mxu0
    %v1052 = vadd.f32 %v919, %v1051
    %v1053 = vpop.f32.mrb[0].mxu0
    %v1054 = vpop.f32.mrb[0].mxu0
    %v1055 = vpop.f32.mrb[0].mxu0
    %1056 = vdwg.mxu0
    %v1057 = vmax.f32 %v1004, 0.0
    %v1058 = vmax.f32 %v1007, 0.0
    %v1059 = vmax.f32 %v1012, 0.0
    %v1060 = vmax.f32 %v1015, 0.0
    %v1061 = vmax.f32 %v1020, 0.0
    %v1062 = vmax.f32 %v1023, 0.0
    %v1063 = vmax.f32 %v1028, 0.0
    %v1064 = vmax.f32 %v1031, 0.0
    %v1065 = vmax.f32 %v1036, 0.0
    %v1066 = vmax.f32 %v1039, 0.0
    %v1067 = vmax.f32 %v1044, 0.0
    %v1068 = vmax.f32 %v1047, 0.0
    %v1069 = vmax.f32 %v1052, 0.0
    %v1070 = vpack.c.bf16 %v1058, %v1057
    %v1071 = vpack.c.bf16 %v1060, %v1059
    %v1072 = vpack.c.bf16 %v1062, %v1061
    %v1073 = vpack.c.bf16 %v1064, %v1063
    %v1074 = vpack.c.bf16 %v1066, %v1065
    %v1075 = vpack.c.bf16 %v1068, %v1067
    %v1076 = vpack.c.bf16 %v1069, %v1069
    %s1077 = scalar_lea.vmem %s7, 64
    %v1078 = vld [vmem:[%s1077] sm:$0xf]
    %v1079 = vld [vmem:[%s1077 + $0x4] sm:$0xf]
    %v1080 = vld [vmem:[%s1077 + $0x8] sm:$0xf]
    %v1081 = vld [vmem:[%s1077 + $0xc] sm:$0xf]
    %v1082 = vld [vmem:[%s1077 + $0x10] sm:$0xf]
    %v1083 = vld [vmem:[%s1077 + $0x14] sm:$0xf]
    %v1084 = vld [vmem:[%s1077 + $0x18] sm:$0xf]
    %v1085 = vld [vmem:[%s1077 + $0x1c] sm:$0xf]
    %v1086 = vld [vmem:[%s1077 + $0x20] sm:$0xf]
    %v1087 = vld [vmem:[%s1077 + $0x24] sm:$0xf]
    %v1088 = vld [vmem:[%s1077 + $0x28] sm:$0xf]
    %v1089 = vld [vmem:[%s1077 + $0x2c] sm:$0xf]
    %v1090 = vld [vmem:[%s1077 + $0x30] sm:$0xf]
    %v1091 = vld [vmem:[%s1077 + $0x34] sm:$0xf]
    %v1092 = vld [vmem:[%s1077 + $0x38] sm:$0xf]
    %v1093 = vld [vmem:[%s1077 + $0x3c] sm:$0xf]
    %s1094 = scalar_lea.vmem %s8, 1
    %v1095 = vld [vmem:[%s1094] sm:$0x1]
    %v1097 = vlaneseq
    %v1098 = vshrl.u32 %v1097, 7
    %v1099 = vsub.s32 0, %v1098
    %v1100 = vrot.slane %v1095, %v1099
    %v1118 = vunpack.c.l.b16 %v1078
    %v1119 = vunpack.c.l.b16 %v1079
    %v1120 = vunpack.c.l.b16 %v1080
    %v1121 = vunpack.c.l.b16 %v1081
    %v1122 = vunpack.c.l.b16 %v1082
    %v1123 = vunpack.c.l.b16 %v1083
    %v1124 = vunpack.c.l.b16 %v1084
    %v1125 = vunpack.c.l.b16 %v1085
    %v1126 = vunpack.c.l.b16 %v1086
    %v1127 = vunpack.c.l.b16 %v1087
    %v1128 = vunpack.c.l.b16 %v1088
    %v1129 = vunpack.c.l.b16 %v1089
    %v1130 = vunpack.c.l.b16 %v1090
    %v1131 = vunpack.c.l.b16 %v1091
    %v1132 = vunpack.c.l.b16 %v1092
    %v1133 = vunpack.c.l.b16 %v1093
    %v1134 = vpack.c.b16 %v1119, %v1118
    %v1135 = vpack.c.b16 %v1121, %v1120
    %v1136 = vpack.c.b16 %v1123, %v1122
    %v1137 = vpack.c.b16 %v1125, %v1124
    %v1138 = vpack.c.b16 %v1127, %v1126
    %v1139 = vpack.c.b16 %v1129, %v1128
    %v1140 = vpack.c.b16 %v1131, %v1130
    %v1141 = vpack.c.b16 %v1133, %v1132
    %1150 = vmatprep.subr.bf16.mxu0 0
    %1151 = vmatpush1.bf16.msra.mxu0 %v1134
    %1152 = vmatprep.subr.bf16.mxu0 0
    %1153 = vmatpush1.bf16.msra.mxu0 %v1135
    %1154 = vmatprep.subr.bf16.mxu0 0
    %1155 = vmatpush1.bf16.msra.mxu0 %v1136
    %1156 = vmatprep.subr.bf16.mxu0 0
    %1157 = vmatpush1.bf16.msra.mxu0 %v1137
    %1158 = vmatprep.subr.bf16.mxu0 0
    %1159 = vmatpush1.bf16.msra.mxu0 %v1138
    %1160 = vmatprep.subr.bf16.mxu0 0
    %1161 = vmatpush1.bf16.msra.mxu0 %v1139
    %1162 = vmatprep.subr.bf16.mxu0 0
    %1163 = vmatpush1.bf16.msra.mxu0 %v1140
    %1164 = vmatprep.subr.bf16.mxu0 0
    %1165 = vmatpush1.bf16.msra.mxu0 %v1141
    %1166 = vmatprep.subr.bf16.mxu0 0
    %1167 = vmatpush1.bf16.msra.mxu0 0
    %1168 = vmatprep.subr.bf16.mxu0 0
    %1169 = vmatpush1.bf16.msra.mxu0 0
    %1170 = vmatprep.subr.bf16.mxu0 0
    %1171 = vmatpush1.bf16.msra.mxu0 0
    %1172 = vmatprep.subr.bf16.mxu0 0
    %1173 = vmatpush1.bf16.msra.mxu0 0
    %1174 = vmatprep.subr.bf16.mxu0 0
    %1175 = vmatpush1.bf16.msra.mxu0 0
    %1176 = vmatprep.subr.bf16.mxu0 0
    %1177 = vmatpush1.bf16.msra.mxu0 0
    %1178 = vmatprep.subr.bf16.mxu0 0
    %1179 = vmatpush1.bf16.msra.mxu0 0
    %1180 = vmatprep.subr.bf16.mxu0 0
    %1181 = vmatpush1.bf16.msra.mxu0 0
    %1182 = vmatprep.mubr.bf16.mxu0 0
    %1183 = vmatmul.mubr.bf16.gmra.mrb[0].mxu0 %v1070
    %v1184 = vpop.f32.mrb[0].mxu0
    %v1185 = vadd.f32 %v1100, %v1184
    %v1186 = vpop.f32.mrb[0].mxu0
    %v1187 = vpop.f32.mrb[0].mxu0
    %v1188 = vadd.f32 %v1100, %v1187
    %v1189 = vpop.f32.mrb[0].mxu0
    %1190 = vmatprep.mubr.bf16.mxu0 0
    %1191 = vmatmul.mubr.bf16.gmra.mrb[0].mxu0 %v1071
    %v1192 = vpop.f32.mrb[0].mxu0
    %v1193 = vadd.f32 %v1100, %v1192
    %v1194 = vpop.f32.mrb[0].mxu0
    %v1195 = vpop.f32.mrb[0].mxu0
    %v1196 = vadd.f32 %v1100, %v1195
    %v1197 = vpop.f32.mrb[0].mxu0
    %1198 = vmatprep.mubr.bf16.mxu0 0
    %1199 = vmatmul.mubr.bf16.gmra.mrb[0].mxu0 %v1072
    %v1200 = vpop.f32.mrb[0].mxu0
    %v1201 = vadd.f32 %v1100, %v1200
    %v1202 = vpop.f32.mrb[0].mxu0
    %v1203 = vpop.f32.mrb[0].mxu0
    %v1204 = vadd.f32 %v1100, %v1203
    %v1205 = vpop.f32.mrb[0].mxu0
    %1206 = vmatprep.mubr.bf16.mxu0 0
    %1207 = vmatmul.mubr.bf16.gmra.mrb[0].mxu0 %v1073
    %v1208 = vpop.f32.mrb[0].mxu0
    %v1209 = vadd.f32 %v1100, %v1208
    %v1210 = vpop.f32.mrb[0].mxu0
    %v1211 = vpop.f32.mrb[0].mxu0
    %v1212 = vadd.f32 %v1100, %v1211
    %v1213 = vpop.f32.mrb[0].mxu0
    %1214 = vmatprep.mubr.bf16.mxu0 0
    %1215 = vmatmul.mubr.bf16.gmra.mrb[0].mxu0 %v1074
    %v1216 = vpop.f32.mrb[0].mxu0
    %v1217 = vadd.f32 %v1100, %v1216
    %v1218 = vpop.f32.mrb[0].mxu0
    %v1219 = vpop.f32.mrb[0].mxu0
    %v1220 = vadd.f32 %v1100, %v1219
    %v1221 = vpop.f32.mrb[0].mxu0
    %1222 = vmatprep.mubr.bf16.mxu0 0
    %1223 = vmatmul.mubr.bf16.gmra.mrb[0].mxu0 %v1075
    %v1224 = vpop.f32.mrb[0].mxu0
    %v1225 = vadd.f32 %v1100, %v1224
    %v1226 = vpop.f32.mrb[0].mxu0
    %v1227 = vpop.f32.mrb[0].mxu0
    %v1228 = vadd.f32 %v1100, %v1227
    %v1229 = vpop.f32.mrb[0].mxu0
    %1230 = vmatprep.mubr.bf16.mxu0 0
    %1231 = vmatmul.mubr.bf16.gmra.mrb[0].mxu0 %v1076
    %v1232 = vpop.f32.mrb[0].mxu0
    %v1233 = vadd.f32 %v1100, %v1232
    %v1234 = vpop.f32.mrb[0].mxu0
    %v1235 = vpop.f32.mrb[0].mxu0
    %v1236 = vpop.f32.mrb[0].mxu0
    %1237 = vdwg.mxu0
    %v1238 = vmax.f32 %v1185, 0.0
    %v1239 = vmax.f32 %v1188, 0.0
    %v1240 = vmax.f32 %v1193, 0.0
    %v1241 = vmax.f32 %v1196, 0.0
    %v1242 = vmax.f32 %v1201, 0.0
    %v1243 = vmax.f32 %v1204, 0.0
    %v1244 = vmax.f32 %v1209, 0.0
    %v1245 = vmax.f32 %v1212, 0.0
    %v1246 = vmax.f32 %v1217, 0.0
    %v1247 = vmax.f32 %v1220, 0.0
    %v1248 = vmax.f32 %v1225, 0.0
    %v1249 = vmax.f32 %v1228, 0.0
    %v1250 = vmax.f32 %v1233, 0.0
    %v1251 = vpack.c.bf16 %v1239, %v1238
    %v1252 = vpack.c.bf16 %v1241, %v1240
    %v1253 = vpack.c.bf16 %v1243, %v1242
    %v1254 = vpack.c.bf16 %v1245, %v1244
    %v1255 = vpack.c.bf16 %v1247, %v1246
    %v1256 = vpack.c.bf16 %v1249, %v1248
    %v1257 = vpack.c.bf16 %v1250, %v1250
    %s1258 = scalar_lea.vmem %s7, 128
    %v1259 = vld [vmem:[%s1258] sm:$0xf]
    %v1260 = vld [vmem:[%s1258 + $0x4] sm:$0xf]
    %v1261 = vld [vmem:[%s1258 + $0x8] sm:$0xf]
    %v1262 = vld [vmem:[%s1258 + $0xc] sm:$0xf]
    %v1263 = vld [vmem:[%s1258 + $0x10] sm:$0xf]
    %v1264 = vld [vmem:[%s1258 + $0x14] sm:$0xf]
    %v1265 = vld [vmem:[%s1258 + $0x18] sm:$0xf]
    %v1266 = vld [vmem:[%s1258 + $0x1c] sm:$0xf]
    %v1267 = vld [vmem:[%s1258 + $0x20] sm:$0xf]
    %v1268 = vld [vmem:[%s1258 + $0x24] sm:$0xf]
    %v1269 = vld [vmem:[%s1258 + $0x28] sm:$0xf]
    %v1270 = vld [vmem:[%s1258 + $0x2c] sm:$0xf]
    %v1271 = vld [vmem:[%s1258 + $0x30] sm:$0xf]
    %v1272 = vld [vmem:[%s1258 + $0x34] sm:$0xf]
    %v1273 = vld [vmem:[%s1258 + $0x38] sm:$0xf]
    %v1274 = vld [vmem:[%s1258 + $0x3c] sm:$0xf]
    %s1275 = scalar_lea.vmem %s8, 2
    %v1276 = vld [vmem:[%s1275] sm:$0x1]
    %v1278 = vlaneseq
    %v1279 = vshrl.u32 %v1278, 7
    %v1280 = vsub.s32 0, %v1279
    %v1281 = vrot.slane %v1276, %v1280
    %v1299 = vunpack.c.l.b16 %v1259
    %v1300 = vunpack.c.l.b16 %v1260
    %v1301 = vunpack.c.l.b16 %v1261
    %v1302 = vunpack.c.l.b16 %v1262
    %v1303 = vunpack.c.l.b16 %v1263
    %v1304 = vunpack.c.l.b16 %v1264
    %v1305 = vunpack.c.l.b16 %v1265
    %v1306 = vunpack.c.l.b16 %v1266
    %v1307 = vunpack.c.l.b16 %v1267
    %v1308 = vunpack.c.l.b16 %v1268
    %v1309 = vunpack.c.l.b16 %v1269
    %v1310 = vunpack.c.l.b16 %v1270
    %v1311 = vunpack.c.l.b16 %v1271
    %v1312 = vunpack.c.l.b16 %v1272
    %v1313 = vunpack.c.l.b16 %v1273
    %v1314 = vunpack.c.l.b16 %v1274
    %v1315 = vpack.c.b16 %v1300, %v1299
    %v1316 = vpack.c.b16 %v1302, %v1301
    %v1317 = vpack.c.b16 %v1304, %v1303
    %v1318 = vpack.c.b16 %v1306, %v1305
    %v1319 = vpack.c.b16 %v1308, %v1307
    %v1320 = vpack.c.b16 %v1310, %v1309
    %v1321 = vpack.c.b16 %v1312, %v1311
    %v1322 = vpack.c.b16 %v1314, %v1313
    %1331 = vmatprep.subr.bf16.mxu0 0
    %1332 = vmatpush1.bf16.msra.mxu0 %v1315
    %1333 = vmatprep.subr.bf16.mxu0 0
    %1334 = vmatpush1.bf16.msra.mxu0 %v1316
    %1335 = vmatprep.subr.bf16.mxu0 0
    %1336 = vmatpush1.bf16.msra.mxu0 %v1317
    %1337 = vmatprep.subr.bf16.mxu0 0
    %1338 = vmatpush1.bf16.msra.mxu0 %v1318
    %1339 = vmatprep.subr.bf16.mxu0 0
    %1340 = vmatpush1.bf16.msra.mxu0 %v1319
    %1341 = vmatprep.subr.bf16.mxu0 0
    %1342 = vmatpush1.bf16.msra.mxu0 %v1320
    %1343 = vmatprep.subr.bf16.mxu0 0
    %1344 = vmatpush1.bf16.msra.mxu0 %v1321
    %1345 = vmatprep.subr.bf16.mxu0 0
    %1346 = vmatpush1.bf16.msra.mxu0 %v1322
    %1347 = vmatprep.subr.bf16.mxu0 0
    %1348 = vmatpush1.bf16.msra.mxu0 0
    %1349 = vmatprep.subr.bf16.mxu0 0
    %1350 = vmatpush1.bf16.msra.mxu0 0
    %1351 = vmatprep.subr.bf16.mxu0 0
    %1352 = vmatpush1.bf16.msra.mxu0 0
    %1353 = vmatprep.subr.bf16.mxu0 0
    %1354 = vmatpush1.bf16.msra.mxu0 0
    %1355 = vmatprep.subr.bf16.mxu0 0
    %1356 = vmatpush1.bf16.msra.mxu0 0
    %1357 = vmatprep.subr.bf16.mxu0 0
    %1358 = vmatpush1.bf16.msra.mxu0 0
    %1359 = vmatprep.subr.bf16.mxu0 0
    %1360 = vmatpush1.bf16.msra.mxu0 0
    %1361 = vmatprep.subr.bf16.mxu0 0
    %1362 = vmatpush1.bf16.msra.mxu0 0
    %1363 = vmatprep.mubr.bf16.mxu0 0
    %1364 = vmatmul.mubr.bf16.gmra.mrb[0].mxu0 %v1251
    %v1365 = vpop.f32.mrb[0].mxu0
    %v1366 = vadd.f32 %v1281, %v1365
    %v1367 = vpop.f32.mrb[0].mxu0
    %v1368 = vpop.f32.mrb[0].mxu0
    %v1369 = vadd.f32 %v1281, %v1368
    %v1370 = vpop.f32.mrb[0].mxu0
    %1371 = vmatprep.mubr.bf16.mxu0 0
    %1372 = vmatmul.mubr.bf16.gmra.mrb[0].mxu0 %v1252
    %v1373 = vpop.f32.mrb[0].mxu0
    %v1374 = vadd.f32 %v1281, %v1373
    %v1375 = vpop.f32.mrb[0].mxu0
    %v1376 = vpop.f32.mrb[0].mxu0
    %v1377 = vadd.f32 %v1281, %v1376
    %v1378 = vpop.f32.mrb[0].mxu0
    %1379 = vmatprep.mubr.bf16.mxu0 0
    %1380 = vmatmul.mubr.bf16.gmra.mrb[0].mxu0 %v1253
    %v1381 = vpop.f32.mrb[0].mxu0
    %v1382 = vadd.f32 %v1281, %v1381
    %v1383 = vpop.f32.mrb[0].mxu0
    %v1384 = vpop.f32.mrb[0].mxu0
    %v1385 = vadd.f32 %v1281, %v1384
    %v1386 = vpop.f32.mrb[0].mxu0
    %1387 = vmatprep.mubr.bf16.mxu0 0
    %1388 = vmatmul.mubr.bf16.gmra.mrb[0].mxu0 %v1254
    %v1389 = vpop.f32.mrb[0].mxu0
    %v1390 = vadd.f32 %v1281, %v1389
    %v1391 = vpop.f32.mrb[0].mxu0
    %v1392 = vpop.f32.mrb[0].mxu0
    %v1393 = vadd.f32 %v1281, %v1392
    %v1394 = vpop.f32.mrb[0].mxu0
    %1395 = vmatprep.mubr.bf16.mxu0 0
    %1396 = vmatmul.mubr.bf16.gmra.mrb[0].mxu0 %v1255
    %v1397 = vpop.f32.mrb[0].mxu0
    %v1398 = vadd.f32 %v1281, %v1397
    %v1399 = vpop.f32.mrb[0].mxu0
    %v1400 = vpop.f32.mrb[0].mxu0
    %v1401 = vadd.f32 %v1281, %v1400
    %v1402 = vpop.f32.mrb[0].mxu0
    %1403 = vmatprep.mubr.bf16.mxu0 0
    %1404 = vmatmul.mubr.bf16.gmra.mrb[0].mxu0 %v1256
    %v1405 = vpop.f32.mrb[0].mxu0
    %v1406 = vadd.f32 %v1281, %v1405
    %v1407 = vpop.f32.mrb[0].mxu0
    %v1408 = vpop.f32.mrb[0].mxu0
    %v1409 = vadd.f32 %v1281, %v1408
    %v1410 = vpop.f32.mrb[0].mxu0
    %1411 = vmatprep.mubr.bf16.mxu0 0
    %1412 = vmatmul.mubr.bf16.gmra.mrb[0].mxu0 %v1257
    %v1413 = vpop.f32.mrb[0].mxu0
    %v1414 = vadd.f32 %v1281, %v1413
    %v1415 = vpop.f32.mrb[0].mxu0
    %v1416 = vpop.f32.mrb[0].mxu0
    %v1417 = vpop.f32.mrb[0].mxu0
    %1418 = vdwg.mxu0
    %v1419 = vmax.f32 %v1366, 0.0
    %v1420 = vmax.f32 %v1369, 0.0
    %v1421 = vmax.f32 %v1374, 0.0
    %v1422 = vmax.f32 %v1377, 0.0
    %v1423 = vmax.f32 %v1382, 0.0
    %v1424 = vmax.f32 %v1385, 0.0
    %v1425 = vmax.f32 %v1390, 0.0
    %v1426 = vmax.f32 %v1393, 0.0
    %v1427 = vmax.f32 %v1398, 0.0
    %v1428 = vmax.f32 %v1401, 0.0
    %v1429 = vmax.f32 %v1406, 0.0
    %v1430 = vmax.f32 %v1409, 0.0
    %v1431 = vmax.f32 %v1414, 0.0
    %v1432 = vpack.c.bf16 %v1420, %v1419
    %v1433 = vpack.c.bf16 %v1422, %v1421
    %v1434 = vpack.c.bf16 %v1424, %v1423
    %v1435 = vpack.c.bf16 %v1426, %v1425
    %v1436 = vpack.c.bf16 %v1428, %v1427
    %v1437 = vpack.c.bf16 %v1430, %v1429
    %v1438 = vpack.c.bf16 %v1431, %v1431
    %v1439 = vld [vmem:[%s9] sm:$0xf]
    %v1440 = vld [vmem:[%s9 + $0x4] sm:$0xf]
    %v1441 = vld [vmem:[%s9 + $0x8] sm:$0xf]
    %v1442 = vld [vmem:[%s9 + $0xc] sm:$0xf]
    %v1443 = vld [vmem:[%s9 + $0x10] sm:$0xf]
    %v1444 = vld [vmem:[%s9 + $0x14] sm:$0xf]
    %v1445 = vld [vmem:[%s9 + $0x18] sm:$0xf]
    %v1446 = vld [vmem:[%s9 + $0x1c] sm:$0xf]
    %v1447 = vld [vmem:[%s9 + $0x20] sm:$0xf]
    %v1448 = vld [vmem:[%s9 + $0x24] sm:$0xf]
    %v1449 = vld [vmem:[%s9 + $0x28] sm:$0xf]
    %v1450 = vld [vmem:[%s9 + $0x2c] sm:$0xf]
    %v1451 = vld [vmem:[%s9 + $0x30] sm:$0xf]
    %v1452 = vld [vmem:[%s9 + $0x34] sm:$0xf]
    %v1453 = vld [vmem:[%s9 + $0x38] sm:$0xf]
    %v1454 = vld [vmem:[%s9 + $0x3c] sm:$0xf]
    %v1455 = vld [vmem:[%s10] sm:$0x1]
    %v1457 = vlaneseq
    %v1458 = vshrl.u32 %v1457, 7
    %v1459 = vsub.s32 0, %v1458
    %v1460 = vrot.slane %v1455, %v1459
    %v1478 = vunpack.c.l.b16 %v1439
    %v1479 = vunpack.c.l.b16 %v1440
    %v1480 = vunpack.c.l.b16 %v1441
    %v1481 = vunpack.c.l.b16 %v1442
    %v1482 = vunpack.c.l.b16 %v1443
    %v1483 = vunpack.c.l.b16 %v1444
    %v1484 = vunpack.c.l.b16 %v1445
    %v1485 = vunpack.c.l.b16 %v1446
    %v1486 = vunpack.c.l.b16 %v1447
    %v1487 = vunpack.c.l.b16 %v1448
    %v1488 = vunpack.c.l.b16 %v1449
    %v1489 = vunpack.c.l.b16 %v1450
    %v1490 = vunpack.c.l.b16 %v1451
    %v1491 = vunpack.c.l.b16 %v1452
    %v1492 = vunpack.c.l.b16 %v1453
    %v1493 = vunpack.c.l.b16 %v1454
    %v1494 = vpack.c.b16 %v1479, %v1478
    %v1495 = vpack.c.b16 %v1481, %v1480
    %v1496 = vpack.c.b16 %v1483, %v1482
    %v1497 = vpack.c.b16 %v1485, %v1484
    %v1498 = vpack.c.b16 %v1487, %v1486
    %v1499 = vpack.c.b16 %v1489, %v1488
    %v1500 = vpack.c.b16 %v1491, %v1490
    %v1501 = vpack.c.b16 %v1493, %v1492
    %1510 = vmatprep.subr.bf16.mxu0 0
    %1511 = vmatpush1.bf16.msra.mxu0 %v1494
    %1512 = vmatprep.subr.bf16.mxu0 0
    %1513 = vmatpush1.bf16.msra.mxu0 %v1495
    %1514 = vmatprep.subr.bf16.mxu0 0
    %1515 = vmatpush1.bf16.msra.mxu0 %v1496
    %1516 = vmatprep.subr.bf16.mxu0 0
    %1517 = vmatpush1.bf16.msra.mxu0 %v1497
    %1518 = vmatprep.subr.bf16.mxu0 0
    %1519 = vmatpush1.bf16.msra.mxu0 %v1498
    %1520 = vmatprep.subr.bf16.mxu0 0
    %1521 = vmatpush1.bf16.msra.mxu0 %v1499
    %1522 = vmatprep.subr.bf16.mxu0 0
    %1523 = vmatpush1.bf16.msra.mxu0 %v1500
    %1524 = vmatprep.subr.bf16.mxu0 0
    %1525 = vmatpush1.bf16.msra.mxu0 %v1501
    %1526 = vmatprep.subr.bf16.mxu0 0
    %1527 = vmatpush1.bf16.msra.mxu0 0
    %1528 = vmatprep.subr.bf16.mxu0 0
    %1529 = vmatpush1.bf16.msra.mxu0 0
    %1530 = vmatprep.subr.bf16.mxu0 0
    %1531 = vmatpush1.bf16.msra.mxu0 0
    %1532 = vmatprep.subr.bf16.mxu0 0
    %1533 = vmatpush1.bf16.msra.mxu0 0
    %1534 = vmatprep.subr.bf16.mxu0 0
    %1535 = vmatpush1.bf16.msra.mxu0 0
    %1536 = vmatprep.subr.bf16.mxu0 0
    %1537 = vmatpush1.bf16.msra.mxu0 0
    %1538 = vmatprep.subr.bf16.mxu0 0
    %1539 = vmatpush1.bf16.msra.mxu0 0
    %1540 = vmatprep.subr.bf16.mxu0 0
    %1541 = vmatpush1.bf16.msra.mxu0 0
    %1542 = vmatprep.mubr.bf16.mxu0 0
    %1543 = vmatmul.mubr.bf16.gmra.mrb[0].mxu0 %v1432
    %v1544 = vpop.f32.mrb[0].mxu0
    %v1545 = vadd.f32 %v1460, %v1544
    %v1546 = vpop.f32.mrb[0].mxu0
    %v1547 = vpop.f32.mrb[0].mxu0
    %v1548 = vadd.f32 %v1460, %v1547
    %v1549 = vpop.f32.mrb[0].mxu0
    %1550 = vmatprep.mubr.bf16.mxu0 0
    %1551 = vmatmul.mubr.bf16.gmra.mrb[0].mxu0 %v1433
    %v1552 = vpop.f32.mrb[0].mxu0
    %v1553 = vadd.f32 %v1460, %v1552
    %v1554 = vpop.f32.mrb[0].mxu0
    %v1555 = vpop.f32.mrb[0].mxu0
    %v1556 = vadd.f32 %v1460, %v1555
    %v1557 = vpop.f32.mrb[0].mxu0
    %1558 = vmatprep.mubr.bf16.mxu0 0
    %1559 = vmatmul.mubr.bf16.gmra.mrb[0].mxu0 %v1434
    %v1560 = vpop.f32.mrb[0].mxu0
    %v1561 = vadd.f32 %v1460, %v1560
    %v1562 = vpop.f32.mrb[0].mxu0
    %v1563 = vpop.f32.mrb[0].mxu0
    %v1564 = vadd.f32 %v1460, %v1563
    %v1565 = vpop.f32.mrb[0].mxu0
    %1566 = vmatprep.mubr.bf16.mxu0 0
    %1567 = vmatmul.mubr.bf16.gmra.mrb[0].mxu0 %v1435
    %v1568 = vpop.f32.mrb[0].mxu0
    %v1569 = vadd.f32 %v1460, %v1568
    %v1570 = vpop.f32.mrb[0].mxu0
    %v1571 = vpop.f32.mrb[0].mxu0
    %v1572 = vadd.f32 %v1460, %v1571
    %v1573 = vpop.f32.mrb[0].mxu0
    %1574 = vmatprep.mubr.bf16.mxu0 0
    %1575 = vmatmul.mubr.bf16.gmra.mrb[0].mxu0 %v1436
    %v1576 = vpop.f32.mrb[0].mxu0
    %v1577 = vadd.f32 %v1460, %v1576
    %v1578 = vpop.f32.mrb[0].mxu0
    %v1579 = vpop.f32.mrb[0].mxu0
    %v1580 = vadd.f32 %v1460, %v1579
    %v1581 = vpop.f32.mrb[0].mxu0
    %1582 = vmatprep.mubr.bf16.mxu0 0
    %1583 = vmatmul.mubr.bf16.gmra.mrb[0].mxu0 %v1437
    %v1584 = vpop.f32.mrb[0].mxu0
    %v1585 = vadd.f32 %v1460, %v1584
    %v1586 = vpop.f32.mrb[0].mxu0
    %v1587 = vpop.f32.mrb[0].mxu0
    %v1588 = vadd.f32 %v1460, %v1587
    %v1589 = vpop.f32.mrb[0].mxu0
    %1590 = vmatprep.mubr.bf16.mxu0 0
    %1591 = vmatmul.mubr.bf16.gmra.mrb[0].mxu0 %v1438
    %v1592 = vpop.f32.mrb[0].mxu0
    %v1593 = vadd.f32 %v1460, %v1592
    %v1594 = vpop.f32.mrb[0].mxu0
    %v1595 = vpop.f32.mrb[0].mxu0
    %v1596 = vpop.f32.mrb[0].mxu0
    %1597 = vdwg.mxu0
    %vm1598 = vcmask 64512
    %1599 = vst.msk [vmem:[%s11] sm:$0xff] %vm1598, %v1545
    %1600 = vst.msk [vmem:[%s11 + $0x8] sm:$0xff] %vm1598, %v1548
    %1601 = vst.msk [vmem:[%s11 + $0x10] sm:$0xff] %vm1598, %v1553
    %1602 = vst.msk [vmem:[%s11 + $0x18] sm:$0xff] %vm1598, %v1556
    %1603 = vst.msk [vmem:[%s11 + $0x20] sm:$0xff] %vm1598, %v1561
    %1604 = vst.msk [vmem:[%s11 + $0x28] sm:$0xff] %vm1598, %v1564
    %1605 = vst.msk [vmem:[%s11 + $0x30] sm:$0xff] %vm1598, %v1569
    %1606 = vst.msk [vmem:[%s11 + $0x38] sm:$0xff] %vm1598, %v1572
    %1607 = vst.msk [vmem:[%s11 + $0x40] sm:$0xff] %vm1598, %v1577
    %1608 = vst.msk [vmem:[%s11 + $0x48] sm:$0xff] %vm1598, %v1580
    %1609 = vst.msk [vmem:[%s11 + $0x50] sm:$0xff] %vm1598, %v1585
    %1610 = vst.msk [vmem:[%s11 + $0x58] sm:$0xff] %vm1598, %v1588
    %1611 = vst.msk [vmem:[%s11 + $0x60] sm:$0xff] %vm1598, %v1593
    // Predicated region
    $region58: #{tpu_custom_call.1} parent=1 // pred_check
      _
    $region59: #{tpu_custom_call.1} parent=1 // pred_check_branch
      %1613 = sbr.rel (0) target = $region61
    $region60: #{tpu_custom_call.1} parent=1 // pred_region
      _
    $region61: #{tpu_custom_call.1} parent=1 // pred_fallthru
      _
    // Predicated region
    $region62: #{tpu_custom_call.1} parent=1 // pred_check
      _
    $region63: #{tpu_custom_call.1} parent=1 // pred_check_branch
      %1615 = sbr.rel (0) target = $region65
    $region64: #{tpu_custom_call.1} parent=1 // pred_region
      _
    $region65: #{tpu_custom_call.1} parent=1 // pred_fallthru
      _
    %1616 = vsyncpa [#allocation3], 1
    %1617 = vsyncpa [#allocation5], 1

</llo_original>
